<compile_context>
chip_gen: v6e
topology: v6e:2x2x1
jax: 0.10.0
libtpu: 0.0.40
codegen_flags: <defaults>
</compile_context>

<pallas_src>
import functools

import jax
import jax.numpy as jnp
from jax import lax
from jax.experimental import pallas as pl
from jax.experimental.pallas import tpu as pltpu


def _sigmoid(x):
    # Exact sigmoid via a single EUP tanh per gate; mul/add co-issue on the VPU slot.
    return 0.5 * jnp.tanh(0.5 * x) + 0.5


def _round_up(x, m):
    return (x + m - 1) // m * m


def _pad_gate_cols(w, h, h_pad):
    """Pad each of the 4 gate blocks along the last axis from width h to h_pad (zeros)."""
    if h_pad == h:
        return w
    parts = jnp.split(w, 4, axis=-1)
    pad = [(0, 0)] * (w.ndim - 1) + [(0, h_pad - h)]
    return jnp.concatenate([jnp.pad(p, pad) for p in parts], axis=-1)


def _lstm_chunk_kernel(xproj_ref, whh_hbm, out_ref, h_ref, c_ref, whh_vmem, whh_sem,
                       *, t_total, t_chunk, unroll):
    """Run one chunk of the LSTM recurrence on VMEM-resident pre-activations.

    Grid = (batch_shard [parallel], time_chunk [arbitrary]).  h_ref/c_ref map every chunk of a
    given batch shard to the same block, so they stay VMEM-resident and double as the recurrent
    state and the final h_n/c_n.  W_hh^T is DMA'd once into a single-buffered VMEM scratch.
    """
    chunk = pl.program_id(1)

    @pl.when(chunk == 0)
    def _():
        # Grid-invariant weight: copy HBM -> VMEM scratch once (re-copy per batch shard is cheap).
        cp = pltpu.make_async_copy(whh_hbm, whh_vmem, whh_sem)
        cp.start()
        cp.wait()
        h_ref[...] = jnp.zeros_like(h_ref)
        c_ref[...] = jnp.zeros_like(c_ref)

    H = h_ref.shape[-1]
    whh = whh_vmem[...]                       # (H_pad, 4*H_pad) bf16, loaded once per chunk

    def step(s, carry):
        h_prev, c_prev = carry
        # gates: (B_blk, 4*H_pad); PyTorch gate order [i, f, g, o]; bias folded into xproj.
        # TODO(synk): on v5e/v6e a weight-stationary MXU path (matmul_push_rhs/acc_lhs/pop) would
        # avoid re-pushing the invariant W_hh every step; kept jnp.dot for portability.
        gates = xproj_ref[s].astype(jnp.float32) + jnp.dot(
            h_prev.astype(whh.dtype), whh, preferred_element_type=jnp.float32)

        i_g = _sigmoid(gates[:, 0 * H:1 * H])
        f_g = _sigmoid(gates[:, 1 * H:2 * H])
        g_g = jnp.tanh(gates[:, 2 * H:3 * H])
        o_g = _sigmoid(gates[:, 3 * H:4 * H])

        c_new = f_g * c_prev + i_g * g_g
        h_new = o_g * jnp.tanh(c_new)

        out_ref[s] = h_new.astype(out_ref.dtype)      # fills the (t_chunk, B_blk, H_pad) slab
        return h_new, c_new

    def run(n_steps):
        h_fin, c_fin = lax.fori_loop(0, n_steps, step, (h_ref[...], c_ref[...]),
                                     unroll=max(1, min(unroll, n_steps)))
        h_ref[...] = h_fin
        c_ref[...] = c_fin

    tail = t_total % t_chunk
    if tail == 0:
        run(t_chunk)
    else:
        last = pl.num_programs(1) - 1

        @pl.when(chunk < last)
        def _():
            run(t_chunk)

        @pl.when(chunk == last)
        def _():
            run(tail)          # static short loop: no per-step selects, no padded-tail compute


@functools.partial(jax.jit, static_argnames=("t_chunk_req", "unroll"))
def encoder_lstm_forward(x_ids, emb_table, w_ih_t, w_hh_t, bias, *, t_chunk_req=256, unroll=8):
    """x_ids: int32 (B, T). Returns (output (B,T,E), (h_n (1,B,E), c_n (1,B,E)))."""
    B, T = x_ids.shape
    H = w_hh_t.shape[0]                       # hidden_size == embedding_size

    # ---- lane/sublane padding: lane-aligned gate slices, unmasked stores --------------------
    H_pad = _round_up(H, 128)
    B_pad = _round_up(B, 8)
    n_bshard = 1
    if B_pad >= 16:
        B_pad = _round_up(B_pad, 16)
        n_bshard = 2                          # shard batch across TensorCores on v7x (no-op 1-TC)
    B_blk = B_pad // n_bshard

    w_ih_t_p = _pad_gate_cols(w_ih_t, H, H_pad)                                   # (E, 4H_pad)
    bias_p = _pad_gate_cols(bias, H, H_pad)                                       # (4H_pad,)
    w_hh_t_p = _pad_gate_cols(jnp.pad(w_hh_t, ((0, H_pad - H), (0, 0))), H, H_pad)  # (H_pad,4H_pad)

    x_ids_p = jnp.pad(x_ids, ((0, B_pad - B), (0, 0)))        # pad batch with token id 0

    # ---- glue outside the recurrence (plain XLA) --------------------------------------------
    x_tbe = jnp.take(emb_table, x_ids_p.T, axis=0)            # (T, B_pad, E), gathered time-major

    # Hoisted input projection: one MXU-saturating bf16 matmul (f32 acc), bias folded in,
    # then streamed to the kernel in bf16 (halves DMA bytes and the double-buffered VMEM block).
    x_proj = (jnp.einsum(
        "tbe,ef->tbf",
        x_tbe.astype(jnp.bfloat16),
        w_ih_t_p.astype(jnp.bfloat16),
        preferred_element_type=jnp.float32,
    ) + bias_p.astype(jnp.float32)).astype(jnp.bfloat16)       # (T, B_pad, 4*H_pad) bf16

    # ---- per-generation VMEM budget -> chunk size --------------------------------------------
    try:
        vmem_cap = int(pltpu.get_tpu_info().vmem_capacity_bytes)
    except Exception:
        vmem_cap = 64 * 1024 * 1024                            # conservative (v7x per-TC)
    vmem_limit = int(min(max(vmem_cap - 16 * 1024 * 1024, 32 * 1024 * 1024), 112 * 1024 * 1024))

    fixed_bytes = (H_pad * 4 * H_pad * 2                       # W_hh^T bf16 scratch (single buffer)
                   + 4 * B_blk * H_pad * 4)                    # h/c state blocks
    per_t_bytes = B_blk * (4 * H_pad * 2 + H_pad * 4)          # xproj bf16 in + f32 out, per step
    t_chunk_max = max(1, (vmem_limit - fixed_bytes) // (2 * per_t_bytes))   # x2: double buffering
    t_chunk = max(1, min(t_chunk_req, T, int(t_chunk_max)))
    num_chunks = pl.cdiv(T, t_chunk)
    T_pad = num_chunks * t_chunk
    if T_pad != T:
        x_proj = jnp.pad(x_proj, ((0, T_pad - T), (0, 0), (0, 0)))

    kernel = functools.partial(_lstm_chunk_kernel, t_total=T, t_chunk=t_chunk, unroll=unroll)

    # TODO(synk): output slab could be emitted in bf16 to halve writeback DMA; kept f32 for parity.
    out_tbe, h_n, c_n = pl.pallas_call(
        kernel,
        out_shape=(
            jax.ShapeDtypeStruct((T_pad, B_pad, H_pad), jnp.float32),   # output (time-major)
            jax.ShapeDtypeStruct((B_pad, H_pad), jnp.float32),          # h_n
            jax.ShapeDtypeStruct((B_pad, H_pad), jnp.float32),          # c_n
        ),
        grid_spec=pltpu.PrefetchScalarGridSpec(
            num_scalar_prefetch=0,
            grid=(n_bshard, num_chunks),
            in_specs=[
                pl.BlockSpec((t_chunk, B_blk, 4 * H_pad), lambda b, c: (c, b, 0)),  # bf16 preacts
                pl.BlockSpec(memory_space=pl.ANY),   # W_hh^T stays in HBM; copied once to scratch
            ],
            out_specs=[
                pl.BlockSpec((t_chunk, B_blk, H_pad), lambda b, c: (c, b, 0)),      # output slab
                pl.BlockSpec((B_blk, H_pad), lambda b, c: (b, 0)),                  # h state / h_n
                pl.BlockSpec((B_blk, H_pad), lambda b, c: (b, 0)),                  # c state / c_n
            ],
            scratch_shapes=[
                pltpu.VMEM((H_pad, 4 * H_pad), jnp.bfloat16),   # resident W_hh^T (single buffer)
                pltpu.SemaphoreType.DMA(()),
            ],
        ),
        compiler_params=pltpu.CompilerParams(
            dimension_semantics=("parallel", "arbitrary"),      # batch shard || serial recurrence
            vmem_limit_bytes=vmem_limit,
        ),
    )(x_proj, w_hh_t_p.astype(jnp.bfloat16))

    output = jnp.transpose(out_tbe[:T, :B, :H], (1, 0, 2))      # (B, T, E) batch_first
    hidden = (h_n[None, :B, :H], c_n[None, :B, :H])             # (num_layers=1, B, E) each
    return output, hidden


def make_params(key, vocabulary_size, embedding_size):
    """Deterministic synthetic parameters matching nn.Embedding + nn.LSTM shapes."""
    E = embedding_size
    H = embedding_size
    k_emb, k_wih, k_whh, k_bih, k_bhh = jax.random.split(key, 5)
    stdv = 1.0 / jnp.sqrt(H)

    emb_table = jax.random.normal(k_emb, (vocabulary_size, E), jnp.float32)
    # PyTorch stores weight_ih_l0: (4H, E), weight_hh_l0: (4H, H); gate order [i,f,g,o].
    w_ih = jax.random.uniform(k_wih, (4 * H, E), jnp.float32, -stdv, stdv)
    w_hh = jax.random.uniform(k_whh, (4 * H, H), jnp.float32, -stdv, stdv)
    b_ih = jax.random.uniform(k_bih, (4 * H,), jnp.float32, -stdv, stdv)
    b_hh = jax.random.uniform(k_bhh, (4 * H,), jnp.float32, -stdv, stdv)

    # Kernel-friendly layouts: transpose so matmuls are (B,E)@(E,4H); fold biases.
    w_ih_t = w_ih.T                      # (E, 4H)
    w_hh_t = w_hh.T                      # (H, 4H)
    bias = b_ih + b_hh                   # (4H,)
    return emb_table, w_ih_t, w_hh_t, bias


def _lstm_reference(x_ids, emb_table, w_ih_t, w_hh_t, bias):
    """Pure-JAX reference using the same reduced-precision (bf16 stream / f32 gates) path."""
    B, T = x_ids.shape
    H = w_hh_t.shape[0]
    x_emb = jnp.take(emb_table, x_ids, axis=0)               # (B, T, E)
    x_proj = (jnp.einsum(
        "bte,ef->btf", x_emb.astype(jnp.bfloat16), w_ih_t.astype(jnp.bfloat16),
        preferred_element_type=jnp.float32) + bias.reshape(1, 1, 4 * H)).astype(jnp.bfloat16)
    whh = w_hh_t.astype(jnp.bfloat16)
    h = jnp.zeros((B, H), jnp.float32)
    c = jnp.zeros((B, H), jnp.float32)
    outs = []
    for t in range(T):
        gates = x_proj[:, t, :].astype(jnp.float32) + jnp.dot(
            h.astype(jnp.bfloat16), whh, preferred_element_type=jnp.float32)
        i_g = jax.nn.sigmoid(gates[:, 0 * H:1 * H])
        f_g = jax.nn.sigmoid(gates[:, 1 * H:2 * H])
        g_g = jnp.tanh(gates[:, 2 * H:3 * H])
        o_g = jax.nn.sigmoid(gates[:, 3 * H:4 * H])
        c = f_g * c + i_g * g_g
        h = o_g * jnp.tanh(c)
        outs.append(h)
    return jnp.stack(outs, axis=1), h, c


if __name__ == "__main__":
    VOCAB = 50
    EMB = 32          # embedding_size == hidden_size
    key = jax.random.PRNGKey(0)
    k_params, k_x1, k_x2 = jax.random.split(key, 3)
    emb_table, w_ih_t, w_hh_t, bias = make_params(k_params, VOCAB, EMB)

    # ---- case 1: small shapes matching the module spec (B=2, T=8) ---------------------------
    B, T = 2, 8
    x_ids = jax.random.randint(k_x1, (B, T), 0, VOCAB, dtype=jnp.int32)

    output, (h_n, c_n) = encoder_lstm_forward(x_ids, emb_table, w_ih_t, w_hh_t, bias)
    jax.block_until_ready((output, h_n, c_n))

    assert output.shape == (B, T, EMB)
    assert h_n.shape == (1, B, EMB) and c_n.shape == (1, B, EMB)
    # output[:, -1, :] must equal h_n[0] for a 1-layer unidirectional LSTM (same kernel values).
    assert jnp.allclose(output[:, -1, :], h_n[0], atol=1e-5)

    ref_out, ref_h, ref_c = _lstm_reference(x_ids, emb_table, w_ih_t, w_hh_t, bias)
    assert jnp.allclose(output, ref_out, atol=2e-2, rtol=2e-2)
    assert jnp.allclose(h_n[0], ref_h, atol=2e-2, rtol=2e-2)
    assert jnp.allclose(c_n[0], ref_c, atol=2e-2, rtol=2e-2)

    # ---- case 2: exercises batch sharding (B=16 -> 2 shards) and the static tail chunk ------
    B2, T2 = 16, 10
    x_ids2 = jax.random.randint(k_x2, (B2, T2), 0, VOCAB, dtype=jnp.int32)
    out2, (h2, c2) = encoder_lstm_forward(x_ids2, emb_table, w_ih_t, w_hh_t, bias, t_chunk_req=4)
    jax.block_until_ready((out2, h2, c2))
    assert out2.shape == (B2, T2, EMB)
    ref_out2, ref_h2, ref_c2 = _lstm_reference(x_ids2, emb_table, w_ih_t, w_hh_t, bias)
    assert jnp.allclose(out2, ref_out2, atol=2e-2, rtol=2e-2)
    assert jnp.allclose(h2[0], ref_h2, atol=2e-2, rtol=2e-2)
    assert jnp.allclose(c2[0], ref_c2, atol=2e-2, rtol=2e-2)

    print("KERNEL_OK")
</pallas_src>

<mosaic_0001>
module attributes {stable_mosaic.version = 11 : i64} {
  func.func @_lstm_chunk_kernel(%arg0: i32, %arg1: i32, %arg2: memref<8x8x512xbf16, #tpu.memory_space<vmem>>, %arg3: memref<128x512xbf16, #tpu.memory_space<any>>, %arg4: memref<8x8x128xf32, #tpu.memory_space<vmem>>, %arg5: memref<8x128xf32, #tpu.memory_space<vmem>>, %arg6: memref<8x128xf32, #tpu.memory_space<vmem>>, %arg7: memref<128x512xbf16, #tpu.memory_space<vmem>>, %arg8: memref<!tpu.dma_semaphore, #tpu.memory_space<semaphore_mem>>) attributes {dimension_semantics = [#tpu.dimension_semantics<parallel>, #tpu.dimension_semantics<arbitrary>], iteration_bounds = array<i64: 1, 1>, scalar_prefetch = 0 : i64, scratch_operands = 2 : i64, tpu.core_type = #tpu.core_type<tc>, window_params = [{transform_indices = @transform_0, window_bounds = array<i64: 8, 8, 512>}, {}, {transform_indices = @transform_2, window_bounds = array<i64: 8, 8, 128>}, {transform_indices = @transform_3, window_bounds = array<i64: 8, 128>}, {transform_indices = @transform_4, window_bounds = array<i64: 8, 128>}]} {
    %c0_i32 = arith.constant 0 : i32
    %0 = arith.cmpi eq, %arg1, %c0_i32 : i32
    %1 = arith.extui %0 : i1 to i32
    %c0_i32_0 = arith.constant 0 : i32
    %2 = arith.cmpi ne, %1, %c0_i32_0 : i32
    scf.if %2 {
      tpu.enqueue_dma source(%arg3 : memref<128x512xbf16, #tpu.memory_space<any>>) target(%arg7 : memref<128x512xbf16, #tpu.memory_space<vmem>>) target_semaphore(%arg8 : memref<!tpu.dma_semaphore, #tpu.memory_space<semaphore_mem>>)
      tpu.wait_dma2 semaphore(%arg8 : memref<!tpu.dma_semaphore, #tpu.memory_space<semaphore_mem>>) src(%arg3 : memref<128x512xbf16, #tpu.memory_space<any>>) dst(%arg7 : memref<128x512xbf16, #tpu.memory_space<vmem>>)
      %cst_122 = arith.constant 0.000000e+00 : f32
      %344 = vector.broadcast %cst_122 : f32 to vector<8x128xf32>
      %c0_123 = arith.constant 0 : index
      %c0_124 = arith.constant 0 : index
      %345 = vector.load %arg5[%c0_123, %c0_124] : memref<8x128xf32, #tpu.memory_space<vmem>>, vector<8x128xf32>
      tpu.vector_store %arg5[%c0_123, %c0_124], %344 {strides = array<i32>} : memref<8x128xf32, #tpu.memory_space<vmem>>, vector<8x128xf32>,
      %cst_125 = arith.constant 0.000000e+00 : f32
      %346 = vector.broadcast %cst_125 : f32 to vector<8x128xf32>
      %c0_126 = arith.constant 0 : index
      %c0_127 = arith.constant 0 : index
      %347 = vector.load %arg6[%c0_126, %c0_127] : memref<8x128xf32, #tpu.memory_space<vmem>>, vector<8x128xf32>
      tpu.vector_store %arg6[%c0_126, %c0_127], %346 {strides = array<i32>} : memref<8x128xf32, #tpu.memory_space<vmem>>, vector<8x128xf32>,
    } else {
    }
    %c0 = arith.constant 0 : index
    %c0_1 = arith.constant 0 : index
    %3 = vector.load %arg7[%c0, %c0_1] : memref<128x512xbf16, #tpu.memory_space<vmem>>, vector<128x512xbf16>
    %c0_2 = arith.constant 0 : index
    %c0_3 = arith.constant 0 : index
    %4 = vector.load %arg5[%c0_2, %c0_3] : memref<8x128xf32, #tpu.memory_space<vmem>>, vector<8x128xf32>
    %c0_4 = arith.constant 0 : index
    %c0_5 = arith.constant 0 : index
    %5 = vector.load %arg6[%c0_4, %c0_5] : memref<8x128xf32, #tpu.memory_space<vmem>>, vector<8x128xf32>
    %c0_i32_6 = arith.constant 0 : i32
    %6 = arith.index_cast %c0_i32_6 : i32 to index
    %c0_7 = arith.constant 0 : index
    %c0_8 = arith.constant 0 : index
    %7 = vector.load %arg2[%6, %c0_7, %c0_8] : memref<8x8x512xbf16, #tpu.memory_space<vmem>>, vector<1x8x512xbf16>
    %8 = vector.shape_cast %7 : vector<1x8x512xbf16> to vector<8x512xbf16>
    %9 = arith.extf %8 : vector<8x512xbf16> to vector<8x512xf32>
    %10 = arith.truncf %4 : vector<8x128xf32> to vector<8x128xbf16>
    %cst = arith.constant dense<0.000000e+00> : vector<8x512xf32>
    %11 = tpu.matmul %10, %3, %cst {dimension_numbers = #tpu.dot_dimension_numbers<[1], [0], [0], [1], [0, 0, 1, 1], [], []>} : vector<8x128xbf16>, vector<128x512xbf16>, vector<8x512xf32> -> vector<8x512xf32>
    %12 = arith.addf %9, %11 : vector<8x512xf32>
    %13 = vector.extract_strided_slice %12 {offsets = [0, 0], sizes = [8, 128], strides = [1, 1]} : vector<8x512xf32> to vector<8x128xf32>
    %cst_9 = arith.constant 5.000000e-01 : f32
    %14 = vector.broadcast %cst_9 : f32 to vector<8x128xf32>
    %15 = arith.mulf %14, %13 : vector<8x128xf32>
    %16 = math.tanh %15 : vector<8x128xf32>
    %cst_10 = arith.constant 5.000000e-01 : f32
    %17 = vector.broadcast %cst_10 : f32 to vector<8x128xf32>
    %18 = arith.mulf %17, %16 : vector<8x128xf32>
    %cst_11 = arith.constant 5.000000e-01 : f32
    %19 = vector.broadcast %cst_11 : f32 to vector<8x128xf32>
    %20 = arith.addf %18, %19 : vector<8x128xf32>
    %21 = vector.extract_strided_slice %12 {offsets = [0, 128], sizes = [8, 128], strides = [1, 1]} : vector<8x512xf32> to vector<8x128xf32>
    %cst_12 = arith.constant 5.000000e-01 : f32
    %22 = vector.broadcast %cst_12 : f32 to vector<8x128xf32>
    %23 = arith.mulf %22, %21 : vector<8x128xf32>
    %24 = math.tanh %23 : vector<8x128xf32>
    %cst_13 = arith.constant 5.000000e-01 : f32
    %25 = vector.broadcast %cst_13 : f32 to vector<8x128xf32>
    %26 = arith.mulf %25, %24 : vector<8x128xf32>
    %cst_14 = arith.constant 5.000000e-01 : f32
    %27 = vector.broadcast %cst_14 : f32 to vector<8x128xf32>
    %28 = arith.addf %26, %27 : vector<8x128xf32>
    %29 = vector.extract_strided_slice %12 {offsets = [0, 256], sizes = [8, 128], strides = [1, 1]} : vector<8x512xf32> to vector<8x128xf32>
    %30 = math.tanh %29 : vector<8x128xf32>
    %31 = vector.extract_strided_slice %12 {offsets = [0, 384], sizes = [8, 128], strides = [1, 1]} : vector<8x512xf32> to vector<8x128xf32>
    %cst_15 = arith.constant 5.000000e-01 : f32
    %32 = vector.broadcast %cst_15 : f32 to vector<8x128xf32>
    %33 = arith.mulf %32, %31 : vector<8x128xf32>
    %34 = math.tanh %33 : vector<8x128xf32>
    %cst_16 = arith.constant 5.000000e-01 : f32
    %35 = vector.broadcast %cst_16 : f32 to vector<8x128xf32>
    %36 = arith.mulf %35, %34 : vector<8x128xf32>
    %cst_17 = arith.constant 5.000000e-01 : f32
    %37 = vector.broadcast %cst_17 : f32 to vector<8x128xf32>
    %38 = arith.addf %36, %37 : vector<8x128xf32>
    %39 = arith.mulf %28, %5 : vector<8x128xf32>
    %40 = arith.mulf %20, %30 : vector<8x128xf32>
    %41 = arith.addf %39, %40 : vector<8x128xf32>
    %42 = math.tanh %41 : vector<8x128xf32>
    %43 = arith.mulf %38, %42 : vector<8x128xf32>
    %44 = arith.index_cast %c0_i32_6 : i32 to index
    %c0_18 = arith.constant 0 : index
    %c0_19 = arith.constant 0 : index
    %45 = vector.load %arg4[%44, %c0_18, %c0_19] : memref<8x8x128xf32, #tpu.memory_space<vmem>>, vector<1x8x128xf32>
    %46 = vector.shape_cast %45 : vector<1x8x128xf32> to vector<8x128xf32>
    %47 = vector.shape_cast %43 : vector<8x128xf32> to vector<1x8x128xf32>
    tpu.vector_store %arg4[%44, %c0_18, %c0_19], %47 {strides = array<i32>} : memref<8x8x128xf32, #tpu.memory_space<vmem>>, vector<1x8x128xf32>,
    %c1_i32 = arith.constant 1 : i32
    %48 = arith.index_cast %c1_i32 : i32 to index
    %c0_20 = arith.constant 0 : index
    %c0_21 = arith.constant 0 : index
    %49 = vector.load %arg2[%48, %c0_20, %c0_21] : memref<8x8x512xbf16, #tpu.memory_space<vmem>>, vector<1x8x512xbf16>
    %50 = vector.shape_cast %49 : vector<1x8x512xbf16> to vector<8x512xbf16>
    %51 = arith.extf %50 : vector<8x512xbf16> to vector<8x512xf32>
    %52 = arith.truncf %43 : vector<8x128xf32> to vector<8x128xbf16>
    %cst_22 = arith.constant dense<0.000000e+00> : vector<8x512xf32>
    %53 = tpu.matmul %52, %3, %cst_22 {dimension_numbers = #tpu.dot_dimension_numbers<[1], [0], [0], [1], [0, 0, 1, 1], [], []>} : vector<8x128xbf16>, vector<128x512xbf16>, vector<8x512xf32> -> vector<8x512xf32>
    %54 = arith.addf %51, %53 : vector<8x512xf32>
    %55 = vector.extract_strided_slice %54 {offsets = [0, 0], sizes = [8, 128], strides = [1, 1]} : vector<8x512xf32> to vector<8x128xf32>
    %cst_23 = arith.constant 5.000000e-01 : f32
    %56 = vector.broadcast %cst_23 : f32 to vector<8x128xf32>
    %57 = arith.mulf %56, %55 : vector<8x128xf32>
    %58 = math.tanh %57 : vector<8x128xf32>
    %cst_24 = arith.constant 5.000000e-01 : f32
    %59 = vector.broadcast %cst_24 : f32 to vector<8x128xf32>
    %60 = arith.mulf %59, %58 : vector<8x128xf32>
    %cst_25 = arith.constant 5.000000e-01 : f32
    %61 = vector.broadcast %cst_25 : f32 to vector<8x128xf32>
    %62 = arith.addf %60, %61 : vector<8x128xf32>
    %63 = vector.extract_strided_slice %54 {offsets = [0, 128], sizes = [8, 128], strides = [1, 1]} : vector<8x512xf32> to vector<8x128xf32>
    %cst_26 = arith.constant 5.000000e-01 : f32
    %64 = vector.broadcast %cst_26 : f32 to vector<8x128xf32>
    %65 = arith.mulf %64, %63 : vector<8x128xf32>
    %66 = math.tanh %65 : vector<8x128xf32>
    %cst_27 = arith.constant 5.000000e-01 : f32
    %67 = vector.broadcast %cst_27 : f32 to vector<8x128xf32>
    %68 = arith.mulf %67, %66 : vector<8x128xf32>
    %cst_28 = arith.constant 5.000000e-01 : f32
    %69 = vector.broadcast %cst_28 : f32 to vector<8x128xf32>
    %70 = arith.addf %68, %69 : vector<8x128xf32>
    %71 = vector.extract_strided_slice %54 {offsets = [0, 256], sizes = [8, 128], strides = [1, 1]} : vector<8x512xf32> to vector<8x128xf32>
    %72 = math.tanh %71 : vector<8x128xf32>
    %73 = vector.extract_strided_slice %54 {offsets = [0, 384], sizes = [8, 128], strides = [1, 1]} : vector<8x512xf32> to vector<8x128xf32>
    %cst_29 = arith.constant 5.000000e-01 : f32
    %74 = vector.broadcast %cst_29 : f32 to vector<8x128xf32>
    %75 = arith.mulf %74, %73 : vector<8x128xf32>
    %76 = math.tanh %75 : vector<8x128xf32>
    %cst_30 = arith.constant 5.000000e-01 : f32
    %77 = vector.broadcast %cst_30 : f32 to vector<8x128xf32>
    %78 = arith.mulf %77, %76 : vector<8x128xf32>
    %cst_31 = arith.constant 5.000000e-01 : f32
    %79 = vector.broadcast %cst_31 : f32 to vector<8x128xf32>
    %80 = arith.addf %78, %79 : vector<8x128xf32>
    %81 = arith.mulf %70, %41 : vector<8x128xf32>
    %82 = arith.mulf %62, %72 : vector<8x128xf32>
    %83 = arith.addf %81, %82 : vector<8x128xf32>
    %84 = math.tanh %83 : vector<8x128xf32>
    %85 = arith.mulf %80, %84 : vector<8x128xf32>
    %86 = arith.index_cast %c1_i32 : i32 to index
    %c0_32 = arith.constant 0 : index
    %c0_33 = arith.constant 0 : index
    %87 = vector.load %arg4[%86, %c0_32, %c0_33] : memref<8x8x128xf32, #tpu.memory_space<vmem>>, vector<1x8x128xf32>
    %88 = vector.shape_cast %87 : vector<1x8x128xf32> to vector<8x128xf32>
    %89 = vector.shape_cast %85 : vector<8x128xf32> to vector<1x8x128xf32>
    tpu.vector_store %arg4[%86, %c0_32, %c0_33], %89 {strides = array<i32>} : memref<8x8x128xf32, #tpu.memory_space<vmem>>, vector<1x8x128xf32>,
    %c2_i32 = arith.constant 2 : i32
    %90 = arith.index_cast %c2_i32 : i32 to index
    %c0_34 = arith.constant 0 : index
    %c0_35 = arith.constant 0 : index
    %91 = vector.load %arg2[%90, %c0_34, %c0_35] : memref<8x8x512xbf16, #tpu.memory_space<vmem>>, vector<1x8x512xbf16>
    %92 = vector.shape_cast %91 : vector<1x8x512xbf16> to vector<8x512xbf16>
    %93 = arith.extf %92 : vector<8x512xbf16> to vector<8x512xf32>
    %94 = arith.truncf %85 : vector<8x128xf32> to vector<8x128xbf16>
    %cst_36 = arith.constant dense<0.000000e+00> : vector<8x512xf32>
    %95 = tpu.matmul %94, %3, %cst_36 {dimension_numbers = #tpu.dot_dimension_numbers<[1], [0], [0], [1], [0, 0, 1, 1], [], []>} : vector<8x128xbf16>, vector<128x512xbf16>, vector<8x512xf32> -> vector<8x512xf32>
    %96 = arith.addf %93, %95 : vector<8x512xf32>
    %97 = vector.extract_strided_slice %96 {offsets = [0, 0], sizes = [8, 128], strides = [1, 1]} : vector<8x512xf32> to vector<8x128xf32>
    %cst_37 = arith.constant 5.000000e-01 : f32
    %98 = vector.broadcast %cst_37 : f32 to vector<8x128xf32>
    %99 = arith.mulf %98, %97 : vector<8x128xf32>
    %100 = math.tanh %99 : vector<8x128xf32>
    %cst_38 = arith.constant 5.000000e-01 : f32
    %101 = vector.broadcast %cst_38 : f32 to vector<8x128xf32>
    %102 = arith.mulf %101, %100 : vector<8x128xf32>
    %cst_39 = arith.constant 5.000000e-01 : f32
    %103 = vector.broadcast %cst_39 : f32 to vector<8x128xf32>
    %104 = arith.addf %102, %103 : vector<8x128xf32>
    %105 = vector.extract_strided_slice %96 {offsets = [0, 128], sizes = [8, 128], strides = [1, 1]} : vector<8x512xf32> to vector<8x128xf32>
    %cst_40 = arith.constant 5.000000e-01 : f32
    %106 = vector.broadcast %cst_40 : f32 to vector<8x128xf32>
    %107 = arith.mulf %106, %105 : vector<8x128xf32>
    %108 = math.tanh %107 : vector<8x128xf32>
    %cst_41 = arith.constant 5.000000e-01 : f32
    %109 = vector.broadcast %cst_41 : f32 to vector<8x128xf32>
    %110 = arith.mulf %109, %108 : vector<8x128xf32>
    %cst_42 = arith.constant 5.000000e-01 : f32
    %111 = vector.broadcast %cst_42 : f32 to vector<8x128xf32>
    %112 = arith.addf %110, %111 : vector<8x128xf32>
    %113 = vector.extract_strided_slice %96 {offsets = [0, 256], sizes = [8, 128], strides = [1, 1]} : vector<8x512xf32> to vector<8x128xf32>
    %114 = math.tanh %113 : vector<8x128xf32>
    %115 = vector.extract_strided_slice %96 {offsets = [0, 384], sizes = [8, 128], strides = [1, 1]} : vector<8x512xf32> to vector<8x128xf32>
    %cst_43 = arith.constant 5.000000e-01 : f32
    %116 = vector.broadcast %cst_43 : f32 to vector<8x128xf32>
    %117 = arith.mulf %116, %115 : vector<8x128xf32>
    %118 = math.tanh %117 : vector<8x128xf32>
    %cst_44 = arith.constant 5.000000e-01 : f32
    %119 = vector.broadcast %cst_44 : f32 to vector<8x128xf32>
    %120 = arith.mulf %119, %118 : vector<8x128xf32>
    %cst_45 = arith.constant 5.000000e-01 : f32
    %121 = vector.broadcast %cst_45 : f32 to vector<8x128xf32>
    %122 = arith.addf %120, %121 : vector<8x128xf32>
    %123 = arith.mulf %112, %83 : vector<8x128xf32>
    %124 = arith.mulf %104, %114 : vector<8x128xf32>
    %125 = arith.addf %123, %124 : vector<8x128xf32>
    %126 = math.tanh %125 : vector<8x128xf32>
    %127 = arith.mulf %122, %126 : vector<8x128xf32>
    %128 = arith.index_cast %c2_i32 : i32 to index
    %c0_46 = arith.constant 0 : index
    %c0_47 = arith.constant 0 : index
    %129 = vector.load %arg4[%128, %c0_46, %c0_47] : memref<8x8x128xf32, #tpu.memory_space<vmem>>, vector<1x8x128xf32>
    %130 = vector.shape_cast %129 : vector<1x8x128xf32> to vector<8x128xf32>
    %131 = vector.shape_cast %127 : vector<8x128xf32> to vector<1x8x128xf32>
    tpu.vector_store %arg4[%128, %c0_46, %c0_47], %131 {strides = array<i32>} : memref<8x8x128xf32, #tpu.memory_space<vmem>>, vector<1x8x128xf32>,
    %c3_i32 = arith.constant 3 : i32
    %132 = arith.index_cast %c3_i32 : i32 to index
    %c0_48 = arith.constant 0 : index
    %c0_49 = arith.constant 0 : index
    %133 = vector.load %arg2[%132, %c0_48, %c0_49] : memref<8x8x512xbf16, #tpu.memory_space<vmem>>, vector<1x8x512xbf16>
    %134 = vector.shape_cast %133 : vector<1x8x512xbf16> to vector<8x512xbf16>
    %135 = arith.extf %134 : vector<8x512xbf16> to vector<8x512xf32>
    %136 = arith.truncf %127 : vector<8x128xf32> to vector<8x128xbf16>
    %cst_50 = arith.constant dense<0.000000e+00> : vector<8x512xf32>
    %137 = tpu.matmul %136, %3, %cst_50 {dimension_numbers = #tpu.dot_dimension_numbers<[1], [0], [0], [1], [0, 0, 1, 1], [], []>} : vector<8x128xbf16>, vector<128x512xbf16>, vector<8x512xf32> -> vector<8x512xf32>
    %138 = arith.addf %135, %137 : vector<8x512xf32>
    %139 = vector.extract_strided_slice %138 {offsets = [0, 0], sizes = [8, 128], strides = [1, 1]} : vector<8x512xf32> to vector<8x128xf32>
    %cst_51 = arith.constant 5.000000e-01 : f32
    %140 = vector.broadcast %cst_51 : f32 to vector<8x128xf32>
    %141 = arith.mulf %140, %139 : vector<8x128xf32>
    %142 = math.tanh %141 : vector<8x128xf32>
    %cst_52 = arith.constant 5.000000e-01 : f32
    %143 = vector.broadcast %cst_52 : f32 to vector<8x128xf32>
    %144 = arith.mulf %143, %142 : vector<8x128xf32>
    %cst_53 = arith.constant 5.000000e-01 : f32
    %145 = vector.broadcast %cst_53 : f32 to vector<8x128xf32>
    %146 = arith.addf %144, %145 : vector<8x128xf32>
    %147 = vector.extract_strided_slice %138 {offsets = [0, 128], sizes = [8, 128], strides = [1, 1]} : vector<8x512xf32> to vector<8x128xf32>
    %cst_54 = arith.constant 5.000000e-01 : f32
    %148 = vector.broadcast %cst_54 : f32 to vector<8x128xf32>
    %149 = arith.mulf %148, %147 : vector<8x128xf32>
    %150 = math.tanh %149 : vector<8x128xf32>
    %cst_55 = arith.constant 5.000000e-01 : f32
    %151 = vector.broadcast %cst_55 : f32 to vector<8x128xf32>
    %152 = arith.mulf %151, %150 : vector<8x128xf32>
    %cst_56 = arith.constant 5.000000e-01 : f32
    %153 = vector.broadcast %cst_56 : f32 to vector<8x128xf32>
    %154 = arith.addf %152, %153 : vector<8x128xf32>
    %155 = vector.extract_strided_slice %138 {offsets = [0, 256], sizes = [8, 128], strides = [1, 1]} : vector<8x512xf32> to vector<8x128xf32>
    %156 = math.tanh %155 : vector<8x128xf32>
    %157 = vector.extract_strided_slice %138 {offsets = [0, 384], sizes = [8, 128], strides = [1, 1]} : vector<8x512xf32> to vector<8x128xf32>
    %cst_57 = arith.constant 5.000000e-01 : f32
    %158 = vector.broadcast %cst_57 : f32 to vector<8x128xf32>
    %159 = arith.mulf %158, %157 : vector<8x128xf32>
    %160 = math.tanh %159 : vector<8x128xf32>
    %cst_58 = arith.constant 5.000000e-01 : f32
    %161 = vector.broadcast %cst_58 : f32 to vector<8x128xf32>
    %162 = arith.mulf %161, %160 : vector<8x128xf32>
    %cst_59 = arith.constant 5.000000e-01 : f32
    %163 = vector.broadcast %cst_59 : f32 to vector<8x128xf32>
    %164 = arith.addf %162, %163 : vector<8x128xf32>
    %165 = arith.mulf %154, %125 : vector<8x128xf32>
    %166 = arith.mulf %146, %156 : vector<8x128xf32>
    %167 = arith.addf %165, %166 : vector<8x128xf32>
    %168 = math.tanh %167 : vector<8x128xf32>
    %169 = arith.mulf %164, %168 : vector<8x128xf32>
    %170 = arith.index_cast %c3_i32 : i32 to index
    %c0_60 = arith.constant 0 : index
    %c0_61 = arith.constant 0 : index
    %171 = vector.load %arg4[%170, %c0_60, %c0_61] : memref<8x8x128xf32, #tpu.memory_space<vmem>>, vector<1x8x128xf32>
    %172 = vector.shape_cast %171 : vector<1x8x128xf32> to vector<8x128xf32>
    %173 = vector.shape_cast %169 : vector<8x128xf32> to vector<1x8x128xf32>
    tpu.vector_store %arg4[%170, %c0_60, %c0_61], %173 {strides = array<i32>} : memref<8x8x128xf32, #tpu.memory_space<vmem>>, vector<1x8x128xf32>,
    %c4_i32 = arith.constant 4 : i32
    %174 = arith.index_cast %c4_i32 : i32 to index
    %c0_62 = arith.constant 0 : index
    %c0_63 = arith.constant 0 : index
    %175 = vector.load %arg2[%174, %c0_62, %c0_63] : memref<8x8x512xbf16, #tpu.memory_space<vmem>>, vector<1x8x512xbf16>
    %176 = vector.shape_cast %175 : vector<1x8x512xbf16> to vector<8x512xbf16>
    %177 = arith.extf %176 : vector<8x512xbf16> to vector<8x512xf32>
    %178 = arith.truncf %169 : vector<8x128xf32> to vector<8x128xbf16>
    %cst_64 = arith.constant dense<0.000000e+00> : vector<8x512xf32>
    %179 = tpu.matmul %178, %3, %cst_64 {dimension_numbers = #tpu.dot_dimension_numbers<[1], [0], [0], [1], [0, 0, 1, 1], [], []>} : vector<8x128xbf16>, vector<128x512xbf16>, vector<8x512xf32> -> vector<8x512xf32>
    %180 = arith.addf %177, %179 : vector<8x512xf32>
    %181 = vector.extract_strided_slice %180 {offsets = [0, 0], sizes = [8, 128], strides = [1, 1]} : vector<8x512xf32> to vector<8x128xf32>
    %cst_65 = arith.constant 5.000000e-01 : f32
    %182 = vector.broadcast %cst_65 : f32 to vector<8x128xf32>
    %183 = arith.mulf %182, %181 : vector<8x128xf32>
    %184 = math.tanh %183 : vector<8x128xf32>
    %cst_66 = arith.constant 5.000000e-01 : f32
    %185 = vector.broadcast %cst_66 : f32 to vector<8x128xf32>
    %186 = arith.mulf %185, %184 : vector<8x128xf32>
    %cst_67 = arith.constant 5.000000e-01 : f32
    %187 = vector.broadcast %cst_67 : f32 to vector<8x128xf32>
    %188 = arith.addf %186, %187 : vector<8x128xf32>
    %189 = vector.extract_strided_slice %180 {offsets = [0, 128], sizes = [8, 128], strides = [1, 1]} : vector<8x512xf32> to vector<8x128xf32>
    %cst_68 = arith.constant 5.000000e-01 : f32
    %190 = vector.broadcast %cst_68 : f32 to vector<8x128xf32>
    %191 = arith.mulf %190, %189 : vector<8x128xf32>
    %192 = math.tanh %191 : vector<8x128xf32>
    %cst_69 = arith.constant 5.000000e-01 : f32
    %193 = vector.broadcast %cst_69 : f32 to vector<8x128xf32>
    %194 = arith.mulf %193, %192 : vector<8x128xf32>
    %cst_70 = arith.constant 5.000000e-01 : f32
    %195 = vector.broadcast %cst_70 : f32 to vector<8x128xf32>
    %196 = arith.addf %194, %195 : vector<8x128xf32>
    %197 = vector.extract_strided_slice %180 {offsets = [0, 256], sizes = [8, 128], strides = [1, 1]} : vector<8x512xf32> to vector<8x128xf32>
    %198 = math.tanh %197 : vector<8x128xf32>
    %199 = vector.extract_strided_slice %180 {offsets = [0, 384], sizes = [8, 128], strides = [1, 1]} : vector<8x512xf32> to vector<8x128xf32>
    %cst_71 = arith.constant 5.000000e-01 : f32
    %200 = vector.broadcast %cst_71 : f32 to vector<8x128xf32>
    %201 = arith.mulf %200, %199 : vector<8x128xf32>
    %202 = math.tanh %201 : vector<8x128xf32>
    %cst_72 = arith.constant 5.000000e-01 : f32
    %203 = vector.broadcast %cst_72 : f32 to vector<8x128xf32>
    %204 = arith.mulf %203, %202 : vector<8x128xf32>
    %cst_73 = arith.constant 5.000000e-01 : f32
    %205 = vector.broadcast %cst_73 : f32 to vector<8x128xf32>
    %206 = arith.addf %204, %205 : vector<8x128xf32>
    %207 = arith.mulf %196, %167 : vector<8x128xf32>
    %208 = arith.mulf %188, %198 : vector<8x128xf32>
    %209 = arith.addf %207, %208 : vector<8x128xf32>
    %210 = math.tanh %209 : vector<8x128xf32>
    %211 = arith.mulf %206, %210 : vector<8x128xf32>
    %212 = arith.index_cast %c4_i32 : i32 to index
    %c0_74 = arith.constant 0 : index
    %c0_75 = arith.constant 0 : index
    %213 = vector.load %arg4[%212, %c0_74, %c0_75] : memref<8x8x128xf32, #tpu.memory_space<vmem>>, vector<1x8x128xf32>
    %214 = vector.shape_cast %213 : vector<1x8x128xf32> to vector<8x128xf32>
    %215 = vector.shape_cast %211 : vector<8x128xf32> to vector<1x8x128xf32>
    tpu.vector_store %arg4[%212, %c0_74, %c0_75], %215 {strides = array<i32>} : memref<8x8x128xf32, #tpu.memory_space<vmem>>, vector<1x8x128xf32>,
    %c5_i32 = arith.constant 5 : i32
    %216 = arith.index_cast %c5_i32 : i32 to index
    %c0_76 = arith.constant 0 : index
    %c0_77 = arith.constant 0 : index
    %217 = vector.load %arg2[%216, %c0_76, %c0_77] : memref<8x8x512xbf16, #tpu.memory_space<vmem>>, vector<1x8x512xbf16>
    %218 = vector.shape_cast %217 : vector<1x8x512xbf16> to vector<8x512xbf16>
    %219 = arith.extf %218 : vector<8x512xbf16> to vector<8x512xf32>
    %220 = arith.truncf %211 : vector<8x128xf32> to vector<8x128xbf16>
    %cst_78 = arith.constant dense<0.000000e+00> : vector<8x512xf32>
    %221 = tpu.matmul %220, %3, %cst_78 {dimension_numbers = #tpu.dot_dimension_numbers<[1], [0], [0], [1], [0, 0, 1, 1], [], []>} : vector<8x128xbf16>, vector<128x512xbf16>, vector<8x512xf32> -> vector<8x512xf32>
    %222 = arith.addf %219, %221 : vector<8x512xf32>
    %223 = vector.extract_strided_slice %222 {offsets = [0, 0], sizes = [8, 128], strides = [1, 1]} : vector<8x512xf32> to vector<8x128xf32>
    %cst_79 = arith.constant 5.000000e-01 : f32
    %224 = vector.broadcast %cst_79 : f32 to vector<8x128xf32>
    %225 = arith.mulf %224, %223 : vector<8x128xf32>
    %226 = math.tanh %225 : vector<8x128xf32>
    %cst_80 = arith.constant 5.000000e-01 : f32
    %227 = vector.broadcast %cst_80 : f32 to vector<8x128xf32>
    %228 = arith.mulf %227, %226 : vector<8x128xf32>
    %cst_81 = arith.constant 5.000000e-01 : f32
    %229 = vector.broadcast %cst_81 : f32 to vector<8x128xf32>
    %230 = arith.addf %228, %229 : vector<8x128xf32>
    %231 = vector.extract_strided_slice %222 {offsets = [0, 128], sizes = [8, 128], strides = [1, 1]} : vector<8x512xf32> to vector<8x128xf32>
    %cst_82 = arith.constant 5.000000e-01 : f32
    %232 = vector.broadcast %cst_82 : f32 to vector<8x128xf32>
    %233 = arith.mulf %232, %231 : vector<8x128xf32>
    %234 = math.tanh %233 : vector<8x128xf32>
    %cst_83 = arith.constant 5.000000e-01 : f32
    %235 = vector.broadcast %cst_83 : f32 to vector<8x128xf32>
    %236 = arith.mulf %235, %234 : vector<8x128xf32>
    %cst_84 = arith.constant 5.000000e-01 : f32
    %237 = vector.broadcast %cst_84 : f32 to vector<8x128xf32>
    %238 = arith.addf %236, %237 : vector<8x128xf32>
    %239 = vector.extract_strided_slice %222 {offsets = [0, 256], sizes = [8, 128], strides = [1, 1]} : vector<8x512xf32> to vector<8x128xf32>
    %240 = math.tanh %239 : vector<8x128xf32>
    %241 = vector.extract_strided_slice %222 {offsets = [0, 384], sizes = [8, 128], strides = [1, 1]} : vector<8x512xf32> to vector<8x128xf32>
    %cst_85 = arith.constant 5.000000e-01 : f32
    %242 = vector.broadcast %cst_85 : f32 to vector<8x128xf32>
    %243 = arith.mulf %242, %241 : vector<8x128xf32>
    %244 = math.tanh %243 : vector<8x128xf32>
    %cst_86 = arith.constant 5.000000e-01 : f32
    %245 = vector.broadcast %cst_86 : f32 to vector<8x128xf32>
    %246 = arith.mulf %245, %244 : vector<8x128xf32>
    %cst_87 = arith.constant 5.000000e-01 : f32
    %247 = vector.broadcast %cst_87 : f32 to vector<8x128xf32>
    %248 = arith.addf %246, %247 : vector<8x128xf32>
    %249 = arith.mulf %238, %209 : vector<8x128xf32>
    %250 = arith.mulf %230, %240 : vector<8x128xf32>
    %251 = arith.addf %249, %250 : vector<8x128xf32>
    %252 = math.tanh %251 : vector<8x128xf32>
    %253 = arith.mulf %248, %252 : vector<8x128xf32>
    %254 = arith.index_cast %c5_i32 : i32 to index
    %c0_88 = arith.constant 0 : index
    %c0_89 = arith.constant 0 : index
    %255 = vector.load %arg4[%254, %c0_88, %c0_89] : memref<8x8x128xf32, #tpu.memory_space<vmem>>, vector<1x8x128xf32>
    %256 = vector.shape_cast %255 : vector<1x8x128xf32> to vector<8x128xf32>
    %257 = vector.shape_cast %253 : vector<8x128xf32> to vector<1x8x128xf32>
    tpu.vector_store %arg4[%254, %c0_88, %c0_89], %257 {strides = array<i32>} : memref<8x8x128xf32, #tpu.memory_space<vmem>>, vector<1x8x128xf32>,
    %c6_i32 = arith.constant 6 : i32
    %258 = arith.index_cast %c6_i32 : i32 to index
    %c0_90 = arith.constant 0 : index
    %c0_91 = arith.constant 0 : index
    %259 = vector.load %arg2[%258, %c0_90, %c0_91] : memref<8x8x512xbf16, #tpu.memory_space<vmem>>, vector<1x8x512xbf16>
    %260 = vector.shape_cast %259 : vector<1x8x512xbf16> to vector<8x512xbf16>
    %261 = arith.extf %260 : vector<8x512xbf16> to vector<8x512xf32>
    %262 = arith.truncf %253 : vector<8x128xf32> to vector<8x128xbf16>
    %cst_92 = arith.constant dense<0.000000e+00> : vector<8x512xf32>
    %263 = tpu.matmul %262, %3, %cst_92 {dimension_numbers = #tpu.dot_dimension_numbers<[1], [0], [0], [1], [0, 0, 1, 1], [], []>} : vector<8x128xbf16>, vector<128x512xbf16>, vector<8x512xf32> -> vector<8x512xf32>
    %264 = arith.addf %261, %263 : vector<8x512xf32>
    %265 = vector.extract_strided_slice %264 {offsets = [0, 0], sizes = [8, 128], strides = [1, 1]} : vector<8x512xf32> to vector<8x128xf32>
    %cst_93 = arith.constant 5.000000e-01 : f32
    %266 = vector.broadcast %cst_93 : f32 to vector<8x128xf32>
    %267 = arith.mulf %266, %265 : vector<8x128xf32>
    %268 = math.tanh %267 : vector<8x128xf32>
    %cst_94 = arith.constant 5.000000e-01 : f32
    %269 = vector.broadcast %cst_94 : f32 to vector<8x128xf32>
    %270 = arith.mulf %269, %268 : vector<8x128xf32>
    %cst_95 = arith.constant 5.000000e-01 : f32
    %271 = vector.broadcast %cst_95 : f32 to vector<8x128xf32>
    %272 = arith.addf %270, %271 : vector<8x128xf32>
    %273 = vector.extract_strided_slice %264 {offsets = [0, 128], sizes = [8, 128], strides = [1, 1]} : vector<8x512xf32> to vector<8x128xf32>
    %cst_96 = arith.constant 5.000000e-01 : f32
    %274 = vector.broadcast %cst_96 : f32 to vector<8x128xf32>
    %275 = arith.mulf %274, %273 : vector<8x128xf32>
    %276 = math.tanh %275 : vector<8x128xf32>
    %cst_97 = arith.constant 5.000000e-01 : f32
    %277 = vector.broadcast %cst_97 : f32 to vector<8x128xf32>
    %278 = arith.mulf %277, %276 : vector<8x128xf32>
    %cst_98 = arith.constant 5.000000e-01 : f32
    %279 = vector.broadcast %cst_98 : f32 to vector<8x128xf32>
    %280 = arith.addf %278, %279 : vector<8x128xf32>
    %281 = vector.extract_strided_slice %264 {offsets = [0, 256], sizes = [8, 128], strides = [1, 1]} : vector<8x512xf32> to vector<8x128xf32>
    %282 = math.tanh %281 : vector<8x128xf32>
    %283 = vector.extract_strided_slice %264 {offsets = [0, 384], sizes = [8, 128], strides = [1, 1]} : vector<8x512xf32> to vector<8x128xf32>
    %cst_99 = arith.constant 5.000000e-01 : f32
    %284 = vector.broadcast %cst_99 : f32 to vector<8x128xf32>
    %285 = arith.mulf %284, %283 : vector<8x128xf32>
    %286 = math.tanh %285 : vector<8x128xf32>
    %cst_100 = arith.constant 5.000000e-01 : f32
    %287 = vector.broadcast %cst_100 : f32 to vector<8x128xf32>
    %288 = arith.mulf %287, %286 : vector<8x128xf32>
    %cst_101 = arith.constant 5.000000e-01 : f32
    %289 = vector.broadcast %cst_101 : f32 to vector<8x128xf32>
    %290 = arith.addf %288, %289 : vector<8x128xf32>
    %291 = arith.mulf %280, %251 : vector<8x128xf32>
    %292 = arith.mulf %272, %282 : vector<8x128xf32>
    %293 = arith.addf %291, %292 : vector<8x128xf32>
    %294 = math.tanh %293 : vector<8x128xf32>
    %295 = arith.mulf %290, %294 : vector<8x128xf32>
    %296 = arith.index_cast %c6_i32 : i32 to index
    %c0_102 = arith.constant 0 : index
    %c0_103 = arith.constant 0 : index
    %297 = vector.load %arg4[%296, %c0_102, %c0_103] : memref<8x8x128xf32, #tpu.memory_space<vmem>>, vector<1x8x128xf32>
    %298 = vector.shape_cast %297 : vector<1x8x128xf32> to vector<8x128xf32>
    %299 = vector.shape_cast %295 : vector<8x128xf32> to vector<1x8x128xf32>
    tpu.vector_store %arg4[%296, %c0_102, %c0_103], %299 {strides = array<i32>} : memref<8x8x128xf32, #tpu.memory_space<vmem>>, vector<1x8x128xf32>,
    %c7_i32 = arith.constant 7 : i32
    %300 = arith.index_cast %c7_i32 : i32 to index
    %c0_104 = arith.constant 0 : index
    %c0_105 = arith.constant 0 : index
    %301 = vector.load %arg2[%300, %c0_104, %c0_105] : memref<8x8x512xbf16, #tpu.memory_space<vmem>>, vector<1x8x512xbf16>
    %302 = vector.shape_cast %301 : vector<1x8x512xbf16> to vector<8x512xbf16>
    %303 = arith.extf %302 : vector<8x512xbf16> to vector<8x512xf32>
    %304 = arith.truncf %295 : vector<8x128xf32> to vector<8x128xbf16>
    %cst_106 = arith.constant dense<0.000000e+00> : vector<8x512xf32>
    %305 = tpu.matmul %304, %3, %cst_106 {dimension_numbers = #tpu.dot_dimension_numbers<[1], [0], [0], [1], [0, 0, 1, 1], [], []>} : vector<8x128xbf16>, vector<128x512xbf16>, vector<8x512xf32> -> vector<8x512xf32>
    %306 = arith.addf %303, %305 : vector<8x512xf32>
    %307 = vector.extract_strided_slice %306 {offsets = [0, 0], sizes = [8, 128], strides = [1, 1]} : vector<8x512xf32> to vector<8x128xf32>
    %cst_107 = arith.constant 5.000000e-01 : f32
    %308 = vector.broadcast %cst_107 : f32 to vector<8x128xf32>
    %309 = arith.mulf %308, %307 : vector<8x128xf32>
    %310 = math.tanh %309 : vector<8x128xf32>
    %cst_108 = arith.constant 5.000000e-01 : f32
    %311 = vector.broadcast %cst_108 : f32 to vector<8x128xf32>
    %312 = arith.mulf %311, %310 : vector<8x128xf32>
    %cst_109 = arith.constant 5.000000e-01 : f32
    %313 = vector.broadcast %cst_109 : f32 to vector<8x128xf32>
    %314 = arith.addf %312, %313 : vector<8x128xf32>
    %315 = vector.extract_strided_slice %306 {offsets = [0, 128], sizes = [8, 128], strides = [1, 1]} : vector<8x512xf32> to vector<8x128xf32>
    %cst_110 = arith.constant 5.000000e-01 : f32
    %316 = vector.broadcast %cst_110 : f32 to vector<8x128xf32>
    %317 = arith.mulf %316, %315 : vector<8x128xf32>
    %318 = math.tanh %317 : vector<8x128xf32>
    %cst_111 = arith.constant 5.000000e-01 : f32
    %319 = vector.broadcast %cst_111 : f32 to vector<8x128xf32>
    %320 = arith.mulf %319, %318 : vector<8x128xf32>
    %cst_112 = arith.constant 5.000000e-01 : f32
    %321 = vector.broadcast %cst_112 : f32 to vector<8x128xf32>
    %322 = arith.addf %320, %321 : vector<8x128xf32>
    %323 = vector.extract_strided_slice %306 {offsets = [0, 256], sizes = [8, 128], strides = [1, 1]} : vector<8x512xf32> to vector<8x128xf32>
    %324 = math.tanh %323 : vector<8x128xf32>
    %325 = vector.extract_strided_slice %306 {offsets = [0, 384], sizes = [8, 128], strides = [1, 1]} : vector<8x512xf32> to vector<8x128xf32>
    %cst_113 = arith.constant 5.000000e-01 : f32
    %326 = vector.broadcast %cst_113 : f32 to vector<8x128xf32>
    %327 = arith.mulf %326, %325 : vector<8x128xf32>
    %328 = math.tanh %327 : vector<8x128xf32>
    %cst_114 = arith.constant 5.000000e-01 : f32
    %329 = vector.broadcast %cst_114 : f32 to vector<8x128xf32>
    %330 = arith.mulf %329, %328 : vector<8x128xf32>
    %cst_115 = arith.constant 5.000000e-01 : f32
    %331 = vector.broadcast %cst_115 : f32 to vector<8x128xf32>
    %332 = arith.addf %330, %331 : vector<8x128xf32>
    %333 = arith.mulf %322, %293 : vector<8x128xf32>
    %334 = arith.mulf %314, %324 : vector<8x128xf32>
    %335 = arith.addf %333, %334 : vector<8x128xf32>
    %336 = math.tanh %335 : vector<8x128xf32>
    %337 = arith.mulf %332, %336 : vector<8x128xf32>
    %338 = arith.index_cast %c7_i32 : i32 to index
    %c0_116 = arith.constant 0 : index
    %c0_117 = arith.constant 0 : index
    %339 = vector.load %arg4[%338, %c0_116, %c0_117] : memref<8x8x128xf32, #tpu.memory_space<vmem>>, vector<1x8x128xf32>
    %340 = vector.shape_cast %339 : vector<1x8x128xf32> to vector<8x128xf32>
    %341 = vector.shape_cast %337 : vector<8x128xf32> to vector<1x8x128xf32>
    tpu.vector_store %arg4[%338, %c0_116, %c0_117], %341 {strides = array<i32>} : memref<8x8x128xf32, #tpu.memory_space<vmem>>, vector<1x8x128xf32>,
    %c8_i32 = arith.constant 8 : i32
    %c0_118 = arith.constant 0 : index
    %c0_119 = arith.constant 0 : index
    %342 = vector.load %arg5[%c0_118, %c0_119] : memref<8x128xf32, #tpu.memory_space<vmem>>, vector<8x128xf32>
    tpu.vector_store %arg5[%c0_118, %c0_119], %337 {strides = array<i32>} : memref<8x128xf32, #tpu.memory_space<vmem>>, vector<8x128xf32>,
    %c0_120 = arith.constant 0 : index
    %c0_121 = arith.constant 0 : index
    %343 = vector.load %arg6[%c0_120, %c0_121] : memref<8x128xf32, #tpu.memory_space<vmem>>, vector<8x128xf32>
    tpu.vector_store %arg6[%c0_120, %c0_121], %335 {strides = array<i32>} : memref<8x128xf32, #tpu.memory_space<vmem>>, vector<8x128xf32>,
    return
  }
  func.func @transform_0(%arg0: i32, %arg1: i32) -> (i32, i32, i32) {
    %c0_i32 = arith.constant 0 : i32
    %c0_i32_0 = arith.constant 0 : i32
    return %arg1, %arg0, %c0_i32 : i32, i32, i32
  }
  func.func @transform_2(%arg0: i32, %arg1: i32) -> (i32, i32, i32) {
    %c0_i32 = arith.constant 0 : i32
    %c0_i32_0 = arith.constant 0 : i32
    return %arg1, %arg0, %c0_i32 : i32, i32, i32
  }
  func.func @transform_3(%arg0: i32, %arg1: i32) -> (i32, i32) {
    %c0_i32 = arith.constant 0 : i32
    %c0_i32_0 = arith.constant 0 : i32
    return %arg0, %c0_i32 : i32, i32
  }
  func.func @transform_4(%arg0: i32, %arg1: i32) -> (i32, i32) {
    %c0_i32 = arith.constant 0 : i32
    %c0_i32_0 = arith.constant 0 : i32
    return %arg0, %c0_i32 : i32, i32
  }
}

</mosaic_0001>

<llo_original>
// kernel: encoder_lstm_forward.1
$region0: #{encoder_lstm_forward.1}
  #allocation0 [shape = 'u32[]', space=smem, size = 0x4, offset = 0x4, fixed_abs, tag = 'smem constant byte address 0x4 - core index']
  #allocation1 [shape = 'u32[144,128]{1,0:T(1,128)}', space=vmem, size = 0x12000, scoped, tag = 'internal scratch']
  #allocation2 [shape = 'bf16[128,512]{1,0:T(8,128)(2,1)}', space=vmem, size = 0x20000, scoped, tag = 'scratch operand']
  #allocation3 [shape = 's32[1]{0}', space=sflag, size = 0x4, scoped, tag = 'scratch operand']
  #allocation4 [shape = 's32[]', space=sflag, size = 0x4, offset = 0, fixed_abs, tag = 'sflag constant byte address 0x0 - dummy sync flag']
  %s0 = inlined_call_operand.vmem [shape: bf16[8,8,512], index: 0, kind: input, shape index: {}]
  %s1 = inlined_call_operand.vmem [shape: bf16[128,512], index: 1, kind: input, shape index: {}]
  %s2 = inlined_call_operand.vmem [shape: f32[8,8,128], index: 2, kind: output, shape index: {0}]
  %s3 = inlined_call_operand.vmem [shape: f32[8,128], index: 3, kind: output, shape index: {1}]
  %s4 = inlined_call_operand.vmem [shape: f32[8,128], index: 4, kind: output, shape index: {2}]
  %5 = xla_tuple %s2, %s3, %s4
  %s6 = sld [smem:[#allocation0]]
  $region68: #{encoder_lstm_forward.1} parent=0
    _
  %s8 = ssub.s32 1, %s6
  %s9 = scalar_select 0, %s8, %s6
  // Predicated region
  $region2: #{encoder_lstm_forward.1} parent=0 // pred_check
    _
  $region3: #{encoder_lstm_forward.1} parent=0 // pred_check_branch
    %11 = sbr.rel (0) target = $region5
  $region4: #{encoder_lstm_forward.1} parent=0 // pred_region
    _
  $region5: #{encoder_lstm_forward.1} parent=0 // pred_fallthru
    _
  %p13 = scmp.eq.s32.totalorder 0, 0
  // Predicated region
  $region6: #{encoder_lstm_forward.1} parent=0 // pred_check
    %p14 = pneg %p13
  $region7: #{encoder_lstm_forward.1} parent=0 // pred_check_branch
    %16 = sbr.rel (%p14) target = $region9
  $region8: #{encoder_lstm_forward.1} parent=0 // pred_region
    %p18 = scmp.lt.u32.totalorder 256, 8
    %p19 = pneg %p18
    // Predicated region
    $region10: #{encoder_lstm_forward.1} parent=8 // pred_check
      _
    $region11: #{encoder_lstm_forward.1} parent=8 // pred_check_branch
      %21 = sbr.rel (%p18) target = $region13
    $region12: #{encoder_lstm_forward.1} parent=8 // pred_region
      %s37 = sand.u32 256, 7
      %p38 = scmp.eq.s32.totalorder %s37, 0
      // Predicated region
      $region25: #{encoder_lstm_forward.1} parent=12 // pred_check
        %p39 = pneg %p38
      $region26: #{encoder_lstm_forward.1} parent=12 // pred_check_branch
        %41 = sbr.rel (%p39) target = $region28
      $region27: #{encoder_lstm_forward.1} parent=12 // pred_region
        loop: start=0, step=1, limit=1
        $region29: #{encoder_lstm_forward.1} parent=27 // loop_pre_header
          _
        $region30: #{encoder_lstm_forward.1} parent=27 // loop_header
          %s43 = sphi 0, %s47
          %p44 = scmp.ge.s32.totalorder %s43, 1
          %s48 = sphi %s1, %s1
          %s49 = sphi [#allocation2], [#allocation2]
        $region31: #{encoder_lstm_forward.1} parent=27 // loop_header_branch
          %46 = sbr.rel (%p44) target = $region35
        $region32: #{encoder_lstm_forward.1} parent=27 // loop_body
          %v50 = vld [vmem:[%s48] sm:$0xff]
          %51 = vst [vmem:[%s49] sm:$0xff] %v50
          %v52 = vld [vmem:[%s48 + $0x8] sm:$0xff]
          %53 = vst [vmem:[%s49 + $0x8] sm:$0xff] %v52
          %v54 = vld [vmem:[%s48 + $0x10] sm:$0xff]
          %55 = vst [vmem:[%s49 + $0x10] sm:$0xff] %v54
          %v56 = vld [vmem:[%s48 + $0x18] sm:$0xff]
          %57 = vst [vmem:[%s49 + $0x18] sm:$0xff] %v56
          %v58 = vld [vmem:[%s48 + $0x20] sm:$0xff]
          %59 = vst [vmem:[%s49 + $0x20] sm:$0xff] %v58
          %v60 = vld [vmem:[%s48 + $0x28] sm:$0xff]
          %61 = vst [vmem:[%s49 + $0x28] sm:$0xff] %v60
          %v62 = vld [vmem:[%s48 + $0x30] sm:$0xff]
          %63 = vst [vmem:[%s49 + $0x30] sm:$0xff] %v62
          %v64 = vld [vmem:[%s48 + $0x38] sm:$0xff]
          %65 = vst [vmem:[%s49 + $0x38] sm:$0xff] %v64
          %v66 = vld [vmem:[%s48 + $0x40] sm:$0xff]
          %67 = vst [vmem:[%s49 + $0x40] sm:$0xff] %v66
          %v68 = vld [vmem:[%s48 + $0x48] sm:$0xff]
          %69 = vst [vmem:[%s49 + $0x48] sm:$0xff] %v68
          %v70 = vld [vmem:[%s48 + $0x50] sm:$0xff]
          %71 = vst [vmem:[%s49 + $0x50] sm:$0xff] %v70
          %v72 = vld [vmem:[%s48 + $0x58] sm:$0xff]
          %73 = vst [vmem:[%s49 + $0x58] sm:$0xff] %v72
          %v74 = vld [vmem:[%s48 + $0x60] sm:$0xff]
          %75 = vst [vmem:[%s49 + $0x60] sm:$0xff] %v74
          %v76 = vld [vmem:[%s48 + $0x68] sm:$0xff]
          %77 = vst [vmem:[%s49 + $0x68] sm:$0xff] %v76
          %v78 = vld [vmem:[%s48 + $0x70] sm:$0xff]
          %79 = vst [vmem:[%s49 + $0x70] sm:$0xff] %v78
          %v80 = vld [vmem:[%s48 + $0x78] sm:$0xff]
          %81 = vst [vmem:[%s49 + $0x78] sm:$0xff] %v80
          %v82 = vld [vmem:[%s48 + $0x80] sm:$0xff]
          %83 = vst [vmem:[%s49 + $0x80] sm:$0xff] %v82
          %v84 = vld [vmem:[%s48 + $0x88] sm:$0xff]
          %85 = vst [vmem:[%s49 + $0x88] sm:$0xff] %v84
          %v86 = vld [vmem:[%s48 + $0x90] sm:$0xff]
          %87 = vst [vmem:[%s49 + $0x90] sm:$0xff] %v86
          %v88 = vld [vmem:[%s48 + $0x98] sm:$0xff]
          %89 = vst [vmem:[%s49 + $0x98] sm:$0xff] %v88
          %v90 = vld [vmem:[%s48 + $0xa0] sm:$0xff]
          %91 = vst [vmem:[%s49 + $0xa0] sm:$0xff] %v90
          %v92 = vld [vmem:[%s48 + $0xa8] sm:$0xff]
          %93 = vst [vmem:[%s49 + $0xa8] sm:$0xff] %v92
          %v94 = vld [vmem:[%s48 + $0xb0] sm:$0xff]
          %95 = vst [vmem:[%s49 + $0xb0] sm:$0xff] %v94
          %v96 = vld [vmem:[%s48 + $0xb8] sm:$0xff]
          %97 = vst [vmem:[%s49 + $0xb8] sm:$0xff] %v96
          %v98 = vld [vmem:[%s48 + $0xc0] sm:$0xff]
          %99 = vst [vmem:[%s49 + $0xc0] sm:$0xff] %v98
          %v100 = vld [vmem:[%s48 + $0xc8] sm:$0xff]
          %101 = vst [vmem:[%s49 + $0xc8] sm:$0xff] %v100
          %v102 = vld [vmem:[%s48 + $0xd0] sm:$0xff]
          %103 = vst [vmem:[%s49 + $0xd0] sm:$0xff] %v102
          %v104 = vld [vmem:[%s48 + $0xd8] sm:$0xff]
          %105 = vst [vmem:[%s49 + $0xd8] sm:$0xff] %v104
          %v106 = vld [vmem:[%s48 + $0xe0] sm:$0xff]
          %107 = vst [vmem:[%s49 + $0xe0] sm:$0xff] %v106
          %v108 = vld [vmem:[%s48 + $0xe8] sm:$0xff]
          %109 = vst [vmem:[%s49 + $0xe8] sm:$0xff] %v108
          %v110 = vld [vmem:[%s48 + $0xf0] sm:$0xff]
          %111 = vst [vmem:[%s49 + $0xf0] sm:$0xff] %v110
          %v112 = vld [vmem:[%s48 + $0xf8] sm:$0xff]
          %113 = vst [vmem:[%s49 + $0xf8] sm:$0xff] %v112
        $region33: #{encoder_lstm_forward.1} parent=27 // loop_footer
          %s47 = sadd.s32 1, %s43
        $region34: #{encoder_lstm_forward.1} parent=27 // loop_footer_branch
          %42 = sbr.rel target = $region30
        $region35: #{encoder_lstm_forward.1} parent=27 // loop_exit
          _
      $region28: #{encoder_lstm_forward.1} parent=12 // pred_fallthru
        _
      %p114 = pneg %p38
      // Predicated region
      $region36: #{encoder_lstm_forward.1} parent=12 // pred_check
        _
      $region37: #{encoder_lstm_forward.1} parent=12 // pred_check_branch
        %116 = sbr.rel (%p38) target = $region39
      $region38: #{encoder_lstm_forward.1} parent=12 // pred_region
        %s117 = sand.u32 256, 7
      $region39: #{encoder_lstm_forward.1} parent=12 // pred_fallthru
        _
    $region13: #{encoder_lstm_forward.1} parent=8 // pred_fallthru
      _
    // Predicated region
    $region14: #{encoder_lstm_forward.1} parent=8 // pred_check
      %p22 = pneg %p18
    $region15: #{encoder_lstm_forward.1} parent=8 // pred_check_branch
      %24 = sbr.rel (%p22) target = $region17
    $region16: #{encoder_lstm_forward.1} parent=8 // pred_region
      %s25 = sshll.u32 1, 256
      %s26 = ssub.s32 %s25, 1
      loop: start=0, step=1, limit=1
      $region18: #{encoder_lstm_forward.1} parent=16 // loop_pre_header
        _
      $region19: #{encoder_lstm_forward.1} parent=16 // loop_header
        %s28 = sphi 0, %s32
        %p29 = scmp.ge.s32.totalorder %s28, 1
        %s33 = sphi %s1, %s1
        %s34 = sphi [#allocation2], [#allocation2]
      $region20: #{encoder_lstm_forward.1} parent=16 // loop_header_branch
        %31 = sbr.rel (%p29) target = $region24
      $region21: #{encoder_lstm_forward.1} parent=16 // loop_body
        %v35 = vld [vmem:[%s33] sm:%s26]
        %36 = vst [vmem:[%s34] sm:%s26] %v35
      $region22: #{encoder_lstm_forward.1} parent=16 // loop_footer
        %s32 = sadd.s32 1, %s28
      $region23: #{encoder_lstm_forward.1} parent=16 // loop_footer_branch
        %27 = sbr.rel target = $region19
      $region24: #{encoder_lstm_forward.1} parent=16 // loop_exit
        _
    $region17: #{encoder_lstm_forward.1} parent=8 // pred_fallthru
      _
    // Predicated region
    $region40: #{encoder_lstm_forward.1} parent=8 // pred_check
      _
    $region41: #{encoder_lstm_forward.1} parent=8 // pred_check_branch
      %120 = sbr.rel (0) target = $region43
    $region42: #{encoder_lstm_forward.1} parent=8 // pred_region
      %121 = vsyncadd [#allocation3], 4096
    $region43: #{encoder_lstm_forward.1} parent=8 // pred_fallthru
      _
    %s122 = smul.u32 4, 16
    %s123 = smul.u32 %s122, 4
    %s124 = sshll.u32 %s123, 4
    %125 = dma.done [#allocation3], %s124
    %126 = vst [vmem:[%s3] sm:$0xff] 0.0
    %127 = vst [vmem:[%s4] sm:$0xff] 0.0
  $region9: #{encoder_lstm_forward.1} parent=0 // pred_fallthru
    _
  %v128 = vld [vmem:[#allocation2] sm:$0xff]
  %v129 = vld [vmem:[#allocation2 + $0x8] sm:$0xff]
  %v130 = vld [vmem:[#allocation2 + $0x10] sm:$0xff]
  %v131 = vld [vmem:[#allocation2 + $0x18] sm:$0xff]
  %v132 = vld [vmem:[#allocation2 + $0x20] sm:$0xff]
  %v133 = vld [vmem:[#allocation2 + $0x28] sm:$0xff]
  %v134 = vld [vmem:[#allocation2 + $0x30] sm:$0xff]
  %v135 = vld [vmem:[#allocation2 + $0x38] sm:$0xff]
  %v136 = vld [vmem:[#allocation2 + $0x40] sm:$0xff]
  %v137 = vld [vmem:[#allocation2 + $0x48] sm:$0xff]
  %v138 = vld [vmem:[#allocation2 + $0x50] sm:$0xff]
  %v139 = vld [vmem:[#allocation2 + $0x58] sm:$0xff]
  %v140 = vld [vmem:[#allocation2 + $0x60] sm:$0xff]
  %v141 = vld [vmem:[#allocation2 + $0x68] sm:$0xff]
  %v142 = vld [vmem:[#allocation2 + $0x70] sm:$0xff]
  %v143 = vld [vmem:[#allocation2 + $0x78] sm:$0xff]
  %v144 = vld [vmem:[#allocation2 + $0x80] sm:$0xff]
  %v145 = vld [vmem:[#allocation2 + $0x88] sm:$0xff]
  %v146 = vld [vmem:[#allocation2 + $0x90] sm:$0xff]
  %v147 = vld [vmem:[#allocation2 + $0x98] sm:$0xff]
  %v148 = vld [vmem:[#allocation2 + $0xa0] sm:$0xff]
  %v149 = vld [vmem:[#allocation2 + $0xa8] sm:$0xff]
  %v150 = vld [vmem:[#allocation2 + $0xb0] sm:$0xff]
  %v151 = vld [vmem:[#allocation2 + $0xb8] sm:$0xff]
  %v152 = vld [vmem:[#allocation2 + $0xc0] sm:$0xff]
  %v153 = vld [vmem:[#allocation2 + $0xc8] sm:$0xff]
  %v154 = vld [vmem:[#allocation2 + $0xd0] sm:$0xff]
  %v155 = vld [vmem:[#allocation2 + $0xd8] sm:$0xff]
  %v156 = vld [vmem:[#allocation2 + $0xe0] sm:$0xff]
  %v157 = vld [vmem:[#allocation2 + $0xe8] sm:$0xff]
  %v158 = vld [vmem:[#allocation2 + $0xf0] sm:$0xff]
  %v159 = vld [vmem:[#allocation2 + $0xf8] sm:$0xff]
  %v160 = vld [vmem:[%s3] sm:$0xff]
  %v161 = vld [vmem:[%s4] sm:$0xff]
  %v162 = vld [vmem:[%s0] sm:$0xff]
  %v163 = vld [vmem:[%s0 + $0x8] sm:$0xff]
  %v164 = vunpack.c.l.bf16 %v162
  %v165 = vunpack.c.h.bf16 %v162
  %v166 = vunpack.c.l.bf16 %v163
  %v167 = vunpack.c.h.bf16 %v163
  %v168 = vpack.c.bf16 %v160, %v160
  %v201 = vunpack.c.l.b16 %v128
  %v202 = vunpack.c.h.b16 %v128
  %v203 = vunpack.c.l.b16 %v129
  %v204 = vunpack.c.h.b16 %v129
  %v205 = vunpack.c.l.b16 %v130
  %v206 = vunpack.c.h.b16 %v130
  %v207 = vunpack.c.l.b16 %v131
  %v208 = vunpack.c.h.b16 %v131
  %v209 = vunpack.c.l.b16 %v132
  %v210 = vunpack.c.h.b16 %v132
  %v211 = vunpack.c.l.b16 %v133
  %v212 = vunpack.c.h.b16 %v133
  %v213 = vunpack.c.l.b16 %v134
  %v214 = vunpack.c.h.b16 %v134
  %v215 = vunpack.c.l.b16 %v135
  %v216 = vunpack.c.h.b16 %v135
  %v217 = vunpack.c.l.b16 %v136
  %v218 = vunpack.c.h.b16 %v136
  %v219 = vunpack.c.l.b16 %v137
  %v220 = vunpack.c.h.b16 %v137
  %v221 = vunpack.c.l.b16 %v138
  %v222 = vunpack.c.h.b16 %v138
  %v223 = vunpack.c.l.b16 %v139
  %v224 = vunpack.c.h.b16 %v139
  %v225 = vunpack.c.l.b16 %v140
  %v226 = vunpack.c.h.b16 %v140
  %v227 = vunpack.c.l.b16 %v141
  %v228 = vunpack.c.h.b16 %v141
  %v229 = vunpack.c.l.b16 %v142
  %v230 = vunpack.c.h.b16 %v142
  %v231 = vunpack.c.l.b16 %v143
  %v232 = vunpack.c.h.b16 %v143
  %v233 = vunpack.c.l.b16 %v144
  %v234 = vunpack.c.h.b16 %v144
  %v235 = vunpack.c.l.b16 %v145
  %v236 = vunpack.c.h.b16 %v145
  %v237 = vunpack.c.l.b16 %v146
  %v238 = vunpack.c.h.b16 %v146
  %v239 = vunpack.c.l.b16 %v147
  %v240 = vunpack.c.h.b16 %v147
  %v241 = vunpack.c.l.b16 %v148
  %v242 = vunpack.c.h.b16 %v148
  %v243 = vunpack.c.l.b16 %v149
  %v244 = vunpack.c.h.b16 %v149
  %v245 = vunpack.c.l.b16 %v150
  %v246 = vunpack.c.h.b16 %v150
  %v247 = vunpack.c.l.b16 %v151
  %v248 = vunpack.c.h.b16 %v151
  %v249 = vunpack.c.l.b16 %v152
  %v250 = vunpack.c.h.b16 %v152
  %v251 = vunpack.c.l.b16 %v153
  %v252 = vunpack.c.h.b16 %v153
  %v253 = vunpack.c.l.b16 %v154
  %v254 = vunpack.c.h.b16 %v154
  %v255 = vunpack.c.l.b16 %v155
  %v256 = vunpack.c.h.b16 %v155
  %v257 = vunpack.c.l.b16 %v156
  %v258 = vunpack.c.h.b16 %v156
  %v259 = vunpack.c.l.b16 %v157
  %v260 = vunpack.c.h.b16 %v157
  %v261 = vunpack.c.l.b16 %v158
  %v262 = vunpack.c.h.b16 %v158
  %v263 = vunpack.c.l.b16 %v159
  %v264 = vunpack.c.h.b16 %v159
  %v265 = vpack.c.b16 %v205, %v201
  %v266 = vpack.c.b16 %v206, %v202
  %v267 = vpack.c.b16 %v207, %v203
  %v268 = vpack.c.b16 %v208, %v204
  %v269 = vpack.c.b16 %v213, %v209
  %v270 = vpack.c.b16 %v214, %v210
  %v271 = vpack.c.b16 %v215, %v211
  %v272 = vpack.c.b16 %v216, %v212
  %v273 = vpack.c.b16 %v221, %v217
  %v274 = vpack.c.b16 %v222, %v218
  %v275 = vpack.c.b16 %v223, %v219
  %v276 = vpack.c.b16 %v224, %v220
  %v277 = vpack.c.b16 %v229, %v225
  %v278 = vpack.c.b16 %v230, %v226
  %v279 = vpack.c.b16 %v231, %v227
  %v280 = vpack.c.b16 %v232, %v228
  %v281 = vpack.c.b16 %v237, %v233
  %v282 = vpack.c.b16 %v238, %v234
  %v283 = vpack.c.b16 %v239, %v235
  %v284 = vpack.c.b16 %v240, %v236
  %v285 = vpack.c.b16 %v245, %v241
  %v286 = vpack.c.b16 %v246, %v242
  %v287 = vpack.c.b16 %v247, %v243
  %v288 = vpack.c.b16 %v248, %v244
  %v289 = vpack.c.b16 %v253, %v249
  %v290 = vpack.c.b16 %v254, %v250
  %v291 = vpack.c.b16 %v255, %v251
  %v292 = vpack.c.b16 %v256, %v252
  %v293 = vpack.c.b16 %v261, %v257
  %v294 = vpack.c.b16 %v262, %v258
  %v295 = vpack.c.b16 %v263, %v259
  %v296 = vpack.c.b16 %v264, %v260
  %329 = vmatprep.subr.bf16.mxu0 %v294
  %330 = vmatpush1.bf16.msra.mxu0 %v293
  %331 = vmatprep.subr.bf16.mxu0 %v290
  %332 = vmatpush1.bf16.msra.mxu0 %v289
  %333 = vmatprep.subr.bf16.mxu0 %v286
  %334 = vmatpush1.bf16.msra.mxu0 %v285
  %335 = vmatprep.subr.bf16.mxu0 %v282
  %336 = vmatpush1.bf16.msra.mxu0 %v281
  %337 = vmatprep.subr.bf16.mxu0 %v278
  %338 = vmatpush1.bf16.msra.mxu0 %v277
  %339 = vmatprep.subr.bf16.mxu0 %v274
  %340 = vmatpush1.bf16.msra.mxu0 %v273
  %341 = vmatprep.subr.bf16.mxu0 %v270
  %342 = vmatpush1.bf16.msra.mxu0 %v269
  %343 = vmatprep.subr.bf16.mxu0 %v266
  %344 = vmatpush1.bf16.msra.mxu0 %v265
  %345 = vmatprep.subr.bf16.mxu0 0
  %346 = vmatpush2.bf16.msra.mxu0 0
  %347 = vmatprep.subr.bf16.mxu0 0
  %348 = vmatpush2.bf16.msra.mxu0 0
  %349 = vmatprep.subr.bf16.mxu0 0
  %350 = vmatpush2.bf16.msra.mxu0 0
  %351 = vmatprep.subr.bf16.mxu0 0
  %352 = vmatpush2.bf16.msra.mxu0 0
  %353 = vmatprep.subr.bf16.mxu0 0
  %354 = vmatpush2.bf16.msra.mxu0 0
  %355 = vmatprep.subr.bf16.mxu0 0
  %356 = vmatpush2.bf16.msra.mxu0 0
  %357 = vmatprep.subr.bf16.mxu0 0
  %358 = vmatpush2.bf16.msra.mxu0 0
  %359 = vmatprep.subr.bf16.mxu0 0
  %360 = vmatpush2.bf16.msra.mxu0 0
  %361 = vmatprep.mubr.bf16.mxu0 0
  %362 = vmatmul.mubr.bf16.gmra.mxu0 %v168
  %v363 = vpop.f32.mrf.mxu0
  %v364 = vadd.f32 0.0, %v363
  %v365 = vpop.f32.mrf.mxu0
  %v366 = vadd.f32 0.0, %v365
  %v367 = vpop.f32.mrf.mxu0
  %v368 = vpop.f32.mrf.mxu0
  %369 = vdwg.mxu0
  %370 = vmatprep.subr.bf16.mxu0 %v296
  %371 = vmatpush1.bf16.msra.mxu0 %v295
  %372 = vmatprep.subr.bf16.mxu0 %v292
  %373 = vmatpush1.bf16.msra.mxu0 %v291
  %374 = vmatprep.subr.bf16.mxu0 %v288
  %375 = vmatpush1.bf16.msra.mxu0 %v287
  %376 = vmatprep.subr.bf16.mxu0 %v284
  %377 = vmatpush1.bf16.msra.mxu0 %v283
  %378 = vmatprep.subr.bf16.mxu0 %v280
  %379 = vmatpush1.bf16.msra.mxu0 %v279
  %380 = vmatprep.subr.bf16.mxu0 %v276
  %381 = vmatpush1.bf16.msra.mxu0 %v275
  %382 = vmatprep.subr.bf16.mxu0 %v272
  %383 = vmatpush1.bf16.msra.mxu0 %v271
  %384 = vmatprep.subr.bf16.mxu0 %v268
  %385 = vmatpush1.bf16.msra.mxu0 %v267
  %386 = vmatprep.subr.bf16.mxu0 0
  %387 = vmatpush2.bf16.msra.mxu0 0
  %388 = vmatprep.subr.bf16.mxu0 0
  %389 = vmatpush2.bf16.msra.mxu0 0
  %390 = vmatprep.subr.bf16.mxu0 0
  %391 = vmatpush2.bf16.msra.mxu0 0
  %392 = vmatprep.subr.bf16.mxu0 0
  %393 = vmatpush2.bf16.msra.mxu0 0
  %394 = vmatprep.subr.bf16.mxu0 0
  %395 = vmatpush2.bf16.msra.mxu0 0
  %396 = vmatprep.subr.bf16.mxu0 0
  %397 = vmatpush2.bf16.msra.mxu0 0
  %398 = vmatprep.subr.bf16.mxu0 0
  %399 = vmatpush2.bf16.msra.mxu0 0
  %400 = vmatprep.subr.bf16.mxu0 0
  %401 = vmatpush2.bf16.msra.mxu0 0
  %402 = vmatprep.mubr.bf16.mxu0 0
  %403 = vmatmul.mubr.bf16.gmra.mxu0 %v168
  %v404 = vpop.f32.mrf.mxu0
  %v405 = vadd.f32 0.0, %v404
  %v406 = vpop.f32.mrf.mxu0
  %v407 = vadd.f32 0.0, %v406
  %v408 = vpop.f32.mrf.mxu0
  %v409 = vpop.f32.mrf.mxu0
  %410 = vdwg.mxu0
  %v411 = vadd.f32 %v164, %v364
  %v412 = vadd.f32 %v165, %v366
  %v413 = vadd.f32 %v166, %v405
  %v414 = vadd.f32 %v167, %v407
  %v415 = vmul.f32 %v411, 0.5
  %v416 = vtanh.pop %v415
  %v417 = vmul.f32 %v416, 0.5
  %v418 = vadd.f32 %v417, 0.5
  %v419 = vmul.f32 %v412, 0.5
  %v420 = vtanh.pop %v419
  %v421 = vmul.f32 %v420, 0.5
  %v422 = vadd.f32 %v421, 0.5
  %v423 = vtanh.pop %v413
  %v424 = vmul.f32 %v414, 0.5
  %v425 = vtanh.pop %v424
  %v426 = vmul.f32 %v425, 0.5
  %v427 = vadd.f32 %v426, 0.5
  %v428 = vmul.f32 %v422, %v161
  %v429 = vmul.f32 %v418, %v423
  %v430 = vadd.f32 %v428, %v429
  %v431 = vtanh.pop %v430
  %v432 = vmul.f32 %v427, %v431
  %433 = vst [vmem:[%s2] sm:$0xff] %v432
  %s434 = scalar_lea.vmem %s0, 16
  %v435 = vld [vmem:[%s434] sm:$0xff]
  %v436 = vld [vmem:[%s434 + $0x8] sm:$0xff]
  %v437 = vunpack.c.l.bf16 %v435
  %v438 = vunpack.c.h.bf16 %v435
  %v439 = vunpack.c.l.bf16 %v436
  %v440 = vunpack.c.h.bf16 %v436
  %v441 = vpack.c.bf16 %v432, %v432
  %442 = vmatprep.subr.bf16.mxu0 %v294
  %443 = vmatpush1.bf16.msra.mxu0 %v293
  %444 = vmatprep.subr.bf16.mxu0 %v290
  %445 = vmatpush1.bf16.msra.mxu0 %v289
  %446 = vmatprep.subr.bf16.mxu0 %v286
  %447 = vmatpush1.bf16.msra.mxu0 %v285
  %448 = vmatprep.subr.bf16.mxu0 %v282
  %449 = vmatpush1.bf16.msra.mxu0 %v281
  %450 = vmatprep.subr.bf16.mxu0 %v278
  %451 = vmatpush1.bf16.msra.mxu0 %v277
  %452 = vmatprep.subr.bf16.mxu0 %v274
  %453 = vmatpush1.bf16.msra.mxu0 %v273
  %454 = vmatprep.subr.bf16.mxu0 %v270
  %455 = vmatpush1.bf16.msra.mxu0 %v269
  %456 = vmatprep.subr.bf16.mxu0 %v266
  %457 = vmatpush1.bf16.msra.mxu0 %v265
  %458 = vmatprep.subr.bf16.mxu0 0
  %459 = vmatpush2.bf16.msra.mxu0 0
  %460 = vmatprep.subr.bf16.mxu0 0
  %461 = vmatpush2.bf16.msra.mxu0 0
  %462 = vmatprep.subr.bf16.mxu0 0
  %463 = vmatpush2.bf16.msra.mxu0 0
  %464 = vmatprep.subr.bf16.mxu0 0
  %465 = vmatpush2.bf16.msra.mxu0 0
  %466 = vmatprep.subr.bf16.mxu0 0
  %467 = vmatpush2.bf16.msra.mxu0 0
  %468 = vmatprep.subr.bf16.mxu0 0
  %469 = vmatpush2.bf16.msra.mxu0 0
  %470 = vmatprep.subr.bf16.mxu0 0
  %471 = vmatpush2.bf16.msra.mxu0 0
  %472 = vmatprep.subr.bf16.mxu0 0
  %473 = vmatpush2.bf16.msra.mxu0 0
  %474 = vmatprep.mubr.bf16.mxu0 0
  %475 = vmatmul.mubr.bf16.gmra.mxu0 %v441
  %v476 = vpop.f32.mrf.mxu0
  %v477 = vadd.f32 0.0, %v476
  %v478 = vpop.f32.mrf.mxu0
  %v479 = vadd.f32 0.0, %v478
  %v480 = vpop.f32.mrf.mxu0
  %v481 = vpop.f32.mrf.mxu0
  %482 = vdwg.mxu0
  %483 = vmatprep.subr.bf16.mxu0 %v296
  %484 = vmatpush1.bf16.msra.mxu0 %v295
  %485 = vmatprep.subr.bf16.mxu0 %v292
  %486 = vmatpush1.bf16.msra.mxu0 %v291
  %487 = vmatprep.subr.bf16.mxu0 %v288
  %488 = vmatpush1.bf16.msra.mxu0 %v287
  %489 = vmatprep.subr.bf16.mxu0 %v284
  %490 = vmatpush1.bf16.msra.mxu0 %v283
  %491 = vmatprep.subr.bf16.mxu0 %v280
  %492 = vmatpush1.bf16.msra.mxu0 %v279
  %493 = vmatprep.subr.bf16.mxu0 %v276
  %494 = vmatpush1.bf16.msra.mxu0 %v275
  %495 = vmatprep.subr.bf16.mxu0 %v272
  %496 = vmatpush1.bf16.msra.mxu0 %v271
  %497 = vmatprep.subr.bf16.mxu0 %v268
  %498 = vmatpush1.bf16.msra.mxu0 %v267
  %499 = vmatprep.subr.bf16.mxu0 0
  %500 = vmatpush2.bf16.msra.mxu0 0
  %501 = vmatprep.subr.bf16.mxu0 0
  %502 = vmatpush2.bf16.msra.mxu0 0
  %503 = vmatprep.subr.bf16.mxu0 0
  %504 = vmatpush2.bf16.msra.mxu0 0
  %505 = vmatprep.subr.bf16.mxu0 0
  %506 = vmatpush2.bf16.msra.mxu0 0
  %507 = vmatprep.subr.bf16.mxu0 0
  %508 = vmatpush2.bf16.msra.mxu0 0
  %509 = vmatprep.subr.bf16.mxu0 0
  %510 = vmatpush2.bf16.msra.mxu0 0
  %511 = vmatprep.subr.bf16.mxu0 0
  %512 = vmatpush2.bf16.msra.mxu0 0
  %513 = vmatprep.subr.bf16.mxu0 0
  %514 = vmatpush2.bf16.msra.mxu0 0
  %515 = vmatprep.mubr.bf16.mxu0 0
  %516 = vmatmul.mubr.bf16.gmra.mxu0 %v441
  %v517 = vpop.f32.mrf.mxu0
  %v518 = vadd.f32 0.0, %v517
  %v519 = vpop.f32.mrf.mxu0
  %v520 = vadd.f32 0.0, %v519
  %v521 = vpop.f32.mrf.mxu0
  %v522 = vpop.f32.mrf.mxu0
  %523 = vdwg.mxu0
  %v524 = vadd.f32 %v437, %v477
  %v525 = vadd.f32 %v438, %v479
  %v526 = vadd.f32 %v439, %v518
  %v527 = vadd.f32 %v440, %v520
  %v528 = vmul.f32 %v524, 0.5
  %v529 = vtanh.pop %v528
  %v530 = vmul.f32 %v529, 0.5
  %v531 = vadd.f32 %v530, 0.5
  %v532 = vmul.f32 %v525, 0.5
  %v533 = vtanh.pop %v532
  %v534 = vmul.f32 %v533, 0.5
  %v535 = vadd.f32 %v534, 0.5
  %v536 = vtanh.pop %v526
  %v537 = vmul.f32 %v527, 0.5
  %v538 = vtanh.pop %v537
  %v539 = vmul.f32 %v538, 0.5
  %v540 = vadd.f32 %v539, 0.5
  %v541 = vmul.f32 %v535, %v430
  %v542 = vmul.f32 %v531, %v536
  %v543 = vadd.f32 %v541, %v542
  %v544 = vtanh.pop %v543
  %v545 = vmul.f32 %v540, %v544
  %s546 = scalar_lea.vmem %s2, 8
  %547 = vst [vmem:[%s546] sm:$0xff] %v545
  %s548 = scalar_lea.vmem %s0, 32
  %v549 = vld [vmem:[%s548] sm:$0xff]
  %v550 = vld [vmem:[%s548 + $0x8] sm:$0xff]
  %v551 = vunpack.c.l.bf16 %v549
  %v552 = vunpack.c.h.bf16 %v549
  %v553 = vunpack.c.l.bf16 %v550
  %v554 = vunpack.c.h.bf16 %v550
  %v555 = vpack.c.bf16 %v545, %v545
  %556 = vmatprep.subr.bf16.mxu0 %v294
  %557 = vmatpush1.bf16.msra.mxu0 %v293
  %558 = vmatprep.subr.bf16.mxu0 %v290
  %559 = vmatpush1.bf16.msra.mxu0 %v289
  %560 = vmatprep.subr.bf16.mxu0 %v286
  %561 = vmatpush1.bf16.msra.mxu0 %v285
  %562 = vmatprep.subr.bf16.mxu0 %v282
  %563 = vmatpush1.bf16.msra.mxu0 %v281
  %564 = vmatprep.subr.bf16.mxu0 %v278
  %565 = vmatpush1.bf16.msra.mxu0 %v277
  %566 = vmatprep.subr.bf16.mxu0 %v274
  %567 = vmatpush1.bf16.msra.mxu0 %v273
  %568 = vmatprep.subr.bf16.mxu0 %v270
  %569 = vmatpush1.bf16.msra.mxu0 %v269
  %570 = vmatprep.subr.bf16.mxu0 %v266
  %571 = vmatpush1.bf16.msra.mxu0 %v265
  %572 = vmatprep.subr.bf16.mxu0 0
  %573 = vmatpush2.bf16.msra.mxu0 0
  %574 = vmatprep.subr.bf16.mxu0 0
  %575 = vmatpush2.bf16.msra.mxu0 0
  %576 = vmatprep.subr.bf16.mxu0 0
  %577 = vmatpush2.bf16.msra.mxu0 0
  %578 = vmatprep.subr.bf16.mxu0 0
  %579 = vmatpush2.bf16.msra.mxu0 0
  %580 = vmatprep.subr.bf16.mxu0 0
  %581 = vmatpush2.bf16.msra.mxu0 0
  %582 = vmatprep.subr.bf16.mxu0 0
  %583 = vmatpush2.bf16.msra.mxu0 0
  %584 = vmatprep.subr.bf16.mxu0 0
  %585 = vmatpush2.bf16.msra.mxu0 0
  %586 = vmatprep.subr.bf16.mxu0 0
  %587 = vmatpush2.bf16.msra.mxu0 0
  %588 = vmatprep.mubr.bf16.mxu0 0
  %589 = vmatmul.mubr.bf16.gmra.mxu0 %v555
  %v590 = vpop.f32.mrf.mxu0
  %v591 = vadd.f32 0.0, %v590
  %v592 = vpop.f32.mrf.mxu0
  %v593 = vadd.f32 0.0, %v592
  %v594 = vpop.f32.mrf.mxu0
  %v595 = vpop.f32.mrf.mxu0
  %596 = vdwg.mxu0
  %597 = vmatprep.subr.bf16.mxu0 %v296
  %598 = vmatpush1.bf16.msra.mxu0 %v295
  %599 = vmatprep.subr.bf16.mxu0 %v292
  %600 = vmatpush1.bf16.msra.mxu0 %v291
  %601 = vmatprep.subr.bf16.mxu0 %v288
  %602 = vmatpush1.bf16.msra.mxu0 %v287
  %603 = vmatprep.subr.bf16.mxu0 %v284
  %604 = vmatpush1.bf16.msra.mxu0 %v283
  %605 = vmatprep.subr.bf16.mxu0 %v280
  %606 = vmatpush1.bf16.msra.mxu0 %v279
  %607 = vmatprep.subr.bf16.mxu0 %v276
  %608 = vmatpush1.bf16.msra.mxu0 %v275
  %609 = vmatprep.subr.bf16.mxu0 %v272
  %610 = vmatpush1.bf16.msra.mxu0 %v271
  %611 = vmatprep.subr.bf16.mxu0 %v268
  %612 = vmatpush1.bf16.msra.mxu0 %v267
  %613 = vmatprep.subr.bf16.mxu0 0
  %614 = vmatpush2.bf16.msra.mxu0 0
  %615 = vmatprep.subr.bf16.mxu0 0
  %616 = vmatpush2.bf16.msra.mxu0 0
  %617 = vmatprep.subr.bf16.mxu0 0
  %618 = vmatpush2.bf16.msra.mxu0 0
  %619 = vmatprep.subr.bf16.mxu0 0
  %620 = vmatpush2.bf16.msra.mxu0 0
  %621 = vmatprep.subr.bf16.mxu0 0
  %622 = vmatpush2.bf16.msra.mxu0 0
  %623 = vmatprep.subr.bf16.mxu0 0
  %624 = vmatpush2.bf16.msra.mxu0 0
  %625 = vmatprep.subr.bf16.mxu0 0
  %626 = vmatpush2.bf16.msra.mxu0 0
  %627 = vmatprep.subr.bf16.mxu0 0
  %628 = vmatpush2.bf16.msra.mxu0 0
  %629 = vmatprep.mubr.bf16.mxu0 0
  %630 = vmatmul.mubr.bf16.gmra.mxu0 %v555
  %v631 = vpop.f32.mrf.mxu0
  %v632 = vadd.f32 0.0, %v631
  %v633 = vpop.f32.mrf.mxu0
  %v634 = vadd.f32 0.0, %v633
  %v635 = vpop.f32.mrf.mxu0
  %v636 = vpop.f32.mrf.mxu0
  %637 = vdwg.mxu0
  %v638 = vadd.f32 %v551, %v591
  %v639 = vadd.f32 %v552, %v593
  %v640 = vadd.f32 %v553, %v632
  %v641 = vadd.f32 %v554, %v634
  %v642 = vmul.f32 %v638, 0.5
  %v643 = vtanh.pop %v642
  %v644 = vmul.f32 %v643, 0.5
  %v645 = vadd.f32 %v644, 0.5
  %v646 = vmul.f32 %v639, 0.5
  %v647 = vtanh.pop %v646
  %v648 = vmul.f32 %v647, 0.5
  %v649 = vadd.f32 %v648, 0.5
  %v650 = vtanh.pop %v640
  %v651 = vmul.f32 %v641, 0.5
  %v652 = vtanh.pop %v651
  %v653 = vmul.f32 %v652, 0.5
  %v654 = vadd.f32 %v653, 0.5
  %v655 = vmul.f32 %v649, %v543
  %v656 = vmul.f32 %v645, %v650
  %v657 = vadd.f32 %v655, %v656
  %v658 = vtanh.pop %v657
  %v659 = vmul.f32 %v654, %v658
  %s660 = scalar_lea.vmem %s2, 16
  %661 = vst [vmem:[%s660] sm:$0xff] %v659
  %s662 = scalar_lea.vmem %s0, 48
  %v663 = vld [vmem:[%s662] sm:$0xff]
  %v664 = vld [vmem:[%s662 + $0x8] sm:$0xff]
  %v665 = vunpack.c.l.bf16 %v663
  %v666 = vunpack.c.h.bf16 %v663
  %v667 = vunpack.c.l.bf16 %v664
  %v668 = vunpack.c.h.bf16 %v664
  %v669 = vpack.c.bf16 %v659, %v659
  %670 = vmatprep.subr.bf16.mxu0 %v294
  %671 = vmatpush1.bf16.msra.mxu0 %v293
  %672 = vmatprep.subr.bf16.mxu0 %v290
  %673 = vmatpush1.bf16.msra.mxu0 %v289
  %674 = vmatprep.subr.bf16.mxu0 %v286
  %675 = vmatpush1.bf16.msra.mxu0 %v285
  %676 = vmatprep.subr.bf16.mxu0 %v282
  %677 = vmatpush1.bf16.msra.mxu0 %v281
  %678 = vmatprep.subr.bf16.mxu0 %v278
  %679 = vmatpush1.bf16.msra.mxu0 %v277
  %680 = vmatprep.subr.bf16.mxu0 %v274
  %681 = vmatpush1.bf16.msra.mxu0 %v273
  %682 = vmatprep.subr.bf16.mxu0 %v270
  %683 = vmatpush1.bf16.msra.mxu0 %v269
  %684 = vmatprep.subr.bf16.mxu0 %v266
  %685 = vmatpush1.bf16.msra.mxu0 %v265
  %686 = vmatprep.subr.bf16.mxu0 0
  %687 = vmatpush2.bf16.msra.mxu0 0
  %688 = vmatprep.subr.bf16.mxu0 0
  %689 = vmatpush2.bf16.msra.mxu0 0
  %690 = vmatprep.subr.bf16.mxu0 0
  %691 = vmatpush2.bf16.msra.mxu0 0
  %692 = vmatprep.subr.bf16.mxu0 0
  %693 = vmatpush2.bf16.msra.mxu0 0
  %694 = vmatprep.subr.bf16.mxu0 0
  %695 = vmatpush2.bf16.msra.mxu0 0
  %696 = vmatprep.subr.bf16.mxu0 0
  %697 = vmatpush2.bf16.msra.mxu0 0
  %698 = vmatprep.subr.bf16.mxu0 0
  %699 = vmatpush2.bf16.msra.mxu0 0
  %700 = vmatprep.subr.bf16.mxu0 0
  %701 = vmatpush2.bf16.msra.mxu0 0
  %702 = vmatprep.mubr.bf16.mxu0 0
  %703 = vmatmul.mubr.bf16.gmra.mxu0 %v669
  %v704 = vpop.f32.mrf.mxu0
  %v705 = vadd.f32 0.0, %v704
  %v706 = vpop.f32.mrf.mxu0
  %v707 = vadd.f32 0.0, %v706
  %v708 = vpop.f32.mrf.mxu0
  %v709 = vpop.f32.mrf.mxu0
  %710 = vdwg.mxu0
  %711 = vmatprep.subr.bf16.mxu0 %v296
  %712 = vmatpush1.bf16.msra.mxu0 %v295
  %713 = vmatprep.subr.bf16.mxu0 %v292
  %714 = vmatpush1.bf16.msra.mxu0 %v291
  %715 = vmatprep.subr.bf16.mxu0 %v288
  %716 = vmatpush1.bf16.msra.mxu0 %v287
  %717 = vmatprep.subr.bf16.mxu0 %v284
  %718 = vmatpush1.bf16.msra.mxu0 %v283
  %719 = vmatprep.subr.bf16.mxu0 %v280
  %720 = vmatpush1.bf16.msra.mxu0 %v279
  %721 = vmatprep.subr.bf16.mxu0 %v276
  %722 = vmatpush1.bf16.msra.mxu0 %v275
  %723 = vmatprep.subr.bf16.mxu0 %v272
  %724 = vmatpush1.bf16.msra.mxu0 %v271
  %725 = vmatprep.subr.bf16.mxu0 %v268
  %726 = vmatpush1.bf16.msra.mxu0 %v267
  %727 = vmatprep.subr.bf16.mxu0 0
  %728 = vmatpush2.bf16.msra.mxu0 0
  %729 = vmatprep.subr.bf16.mxu0 0
  %730 = vmatpush2.bf16.msra.mxu0 0
  %731 = vmatprep.subr.bf16.mxu0 0
  %732 = vmatpush2.bf16.msra.mxu0 0
  %733 = vmatprep.subr.bf16.mxu0 0
  %734 = vmatpush2.bf16.msra.mxu0 0
  %735 = vmatprep.subr.bf16.mxu0 0
  %736 = vmatpush2.bf16.msra.mxu0 0
  %737 = vmatprep.subr.bf16.mxu0 0
  %738 = vmatpush2.bf16.msra.mxu0 0
  %739 = vmatprep.subr.bf16.mxu0 0
  %740 = vmatpush2.bf16.msra.mxu0 0
  %741 = vmatprep.subr.bf16.mxu0 0
  %742 = vmatpush2.bf16.msra.mxu0 0
  %743 = vmatprep.mubr.bf16.mxu0 0
  %744 = vmatmul.mubr.bf16.gmra.mxu0 %v669
  %v745 = vpop.f32.mrf.mxu0
  %v746 = vadd.f32 0.0, %v745
  %v747 = vpop.f32.mrf.mxu0
  %v748 = vadd.f32 0.0, %v747
  %v749 = vpop.f32.mrf.mxu0
  %v750 = vpop.f32.mrf.mxu0
  %751 = vdwg.mxu0
  %v752 = vadd.f32 %v665, %v705
  %v753 = vadd.f32 %v666, %v707
  %v754 = vadd.f32 %v667, %v746
  %v755 = vadd.f32 %v668, %v748
  %v756 = vmul.f32 %v752, 0.5
  %v757 = vtanh.pop %v756
  %v758 = vmul.f32 %v757, 0.5
  %v759 = vadd.f32 %v758, 0.5
  %v760 = vmul.f32 %v753, 0.5
  %v761 = vtanh.pop %v760
  %v762 = vmul.f32 %v761, 0.5
  %v763 = vadd.f32 %v762, 0.5
  %v764 = vtanh.pop %v754
  %v765 = vmul.f32 %v755, 0.5
  %v766 = vtanh.pop %v765
  %v767 = vmul.f32 %v766, 0.5
  %v768 = vadd.f32 %v767, 0.5
  %v769 = vmul.f32 %v763, %v657
  %v770 = vmul.f32 %v759, %v764
  %v771 = vadd.f32 %v769, %v770
  %v772 = vtanh.pop %v771
  %v773 = vmul.f32 %v768, %v772
  %s774 = scalar_lea.vmem %s2, 24
  %775 = vst [vmem:[%s774] sm:$0xff] %v773
  %s776 = scalar_lea.vmem %s0, 64
  %v777 = vld [vmem:[%s776] sm:$0xff]
  %v778 = vld [vmem:[%s776 + $0x8] sm:$0xff]
  %v779 = vunpack.c.l.bf16 %v777
  %v780 = vunpack.c.h.bf16 %v777
  %v781 = vunpack.c.l.bf16 %v778
  %v782 = vunpack.c.h.bf16 %v778
  %v783 = vpack.c.bf16 %v773, %v773
  %784 = vmatprep.subr.bf16.mxu0 %v294
  %785 = vmatpush1.bf16.msra.mxu0 %v293
  %786 = vmatprep.subr.bf16.mxu0 %v290
  %787 = vmatpush1.bf16.msra.mxu0 %v289
  %788 = vmatprep.subr.bf16.mxu0 %v286
  %789 = vmatpush1.bf16.msra.mxu0 %v285
  %790 = vmatprep.subr.bf16.mxu0 %v282
  %791 = vmatpush1.bf16.msra.mxu0 %v281
  %792 = vmatprep.subr.bf16.mxu0 %v278
  %793 = vmatpush1.bf16.msra.mxu0 %v277
  %794 = vmatprep.subr.bf16.mxu0 %v274
  %795 = vmatpush1.bf16.msra.mxu0 %v273
  %796 = vmatprep.subr.bf16.mxu0 %v270
  %797 = vmatpush1.bf16.msra.mxu0 %v269
  %798 = vmatprep.subr.bf16.mxu0 %v266
  %799 = vmatpush1.bf16.msra.mxu0 %v265
  %800 = vmatprep.subr.bf16.mxu0 0
  %801 = vmatpush2.bf16.msra.mxu0 0
  %802 = vmatprep.subr.bf16.mxu0 0
  %803 = vmatpush2.bf16.msra.mxu0 0
  %804 = vmatprep.subr.bf16.mxu0 0
  %805 = vmatpush2.bf16.msra.mxu0 0
  %806 = vmatprep.subr.bf16.mxu0 0
  %807 = vmatpush2.bf16.msra.mxu0 0
  %808 = vmatprep.subr.bf16.mxu0 0
  %809 = vmatpush2.bf16.msra.mxu0 0
  %810 = vmatprep.subr.bf16.mxu0 0
  %811 = vmatpush2.bf16.msra.mxu0 0
  %812 = vmatprep.subr.bf16.mxu0 0
  %813 = vmatpush2.bf16.msra.mxu0 0
  %814 = vmatprep.subr.bf16.mxu0 0
  %815 = vmatpush2.bf16.msra.mxu0 0
  %816 = vmatprep.mubr.bf16.mxu0 0
  %817 = vmatmul.mubr.bf16.gmra.mxu0 %v783
  %v818 = vpop.f32.mrf.mxu0
  %v819 = vadd.f32 0.0, %v818
  %v820 = vpop.f32.mrf.mxu0
  %v821 = vadd.f32 0.0, %v820
  %v822 = vpop.f32.mrf.mxu0
  %v823 = vpop.f32.mrf.mxu0
  %824 = vdwg.mxu0
  %825 = vmatprep.subr.bf16.mxu0 %v296
  %826 = vmatpush1.bf16.msra.mxu0 %v295
  %827 = vmatprep.subr.bf16.mxu0 %v292
  %828 = vmatpush1.bf16.msra.mxu0 %v291
  %829 = vmatprep.subr.bf16.mxu0 %v288
  %830 = vmatpush1.bf16.msra.mxu0 %v287
  %831 = vmatprep.subr.bf16.mxu0 %v284
  %832 = vmatpush1.bf16.msra.mxu0 %v283
  %833 = vmatprep.subr.bf16.mxu0 %v280
  %834 = vmatpush1.bf16.msra.mxu0 %v279
  %835 = vmatprep.subr.bf16.mxu0 %v276
  %836 = vmatpush1.bf16.msra.mxu0 %v275
  %837 = vmatprep.subr.bf16.mxu0 %v272
  %838 = vmatpush1.bf16.msra.mxu0 %v271
  %839 = vmatprep.subr.bf16.mxu0 %v268
  %840 = vmatpush1.bf16.msra.mxu0 %v267
  %841 = vmatprep.subr.bf16.mxu0 0
  %842 = vmatpush2.bf16.msra.mxu0 0
  %843 = vmatprep.subr.bf16.mxu0 0
  %844 = vmatpush2.bf16.msra.mxu0 0
  %845 = vmatprep.subr.bf16.mxu0 0
  %846 = vmatpush2.bf16.msra.mxu0 0
  %847 = vmatprep.subr.bf16.mxu0 0
  %848 = vmatpush2.bf16.msra.mxu0 0
  %849 = vmatprep.subr.bf16.mxu0 0
  %850 = vmatpush2.bf16.msra.mxu0 0
  %851 = vmatprep.subr.bf16.mxu0 0
  %852 = vmatpush2.bf16.msra.mxu0 0
  %853 = vmatprep.subr.bf16.mxu0 0
  %854 = vmatpush2.bf16.msra.mxu0 0
  %855 = vmatprep.subr.bf16.mxu0 0
  %856 = vmatpush2.bf16.msra.mxu0 0
  %857 = vmatprep.mubr.bf16.mxu0 0
  %858 = vmatmul.mubr.bf16.gmra.mxu0 %v783
  %v859 = vpop.f32.mrf.mxu0
  %v860 = vadd.f32 0.0, %v859
  %v861 = vpop.f32.mrf.mxu0
  %v862 = vadd.f32 0.0, %v861
  %v863 = vpop.f32.mrf.mxu0
  %v864 = vpop.f32.mrf.mxu0
  %865 = vdwg.mxu0
  %v866 = vadd.f32 %v779, %v819
  %v867 = vadd.f32 %v780, %v821
  %v868 = vadd.f32 %v781, %v860
  %v869 = vadd.f32 %v782, %v862
  %v870 = vmul.f32 %v866, 0.5
  %v871 = vtanh.pop %v870
  %v872 = vmul.f32 %v871, 0.5
  %v873 = vadd.f32 %v872, 0.5
  %v874 = vmul.f32 %v867, 0.5
  %v875 = vtanh.pop %v874
  %v876 = vmul.f32 %v875, 0.5
  %v877 = vadd.f32 %v876, 0.5
  %v878 = vtanh.pop %v868
  %v879 = vmul.f32 %v869, 0.5
  %v880 = vtanh.pop %v879
  %v881 = vmul.f32 %v880, 0.5
  %v882 = vadd.f32 %v881, 0.5
  %v883 = vmul.f32 %v877, %v771
  %v884 = vmul.f32 %v873, %v878
  %v885 = vadd.f32 %v883, %v884
  %v886 = vtanh.pop %v885
  %v887 = vmul.f32 %v882, %v886
  %s888 = scalar_lea.vmem %s2, 32
  %889 = vst [vmem:[%s888] sm:$0xff] %v887
  %s890 = scalar_lea.vmem %s0, 80
  %v891 = vld [vmem:[%s890] sm:$0xff]
  %v892 = vld [vmem:[%s890 + $0x8] sm:$0xff]
  %v893 = vunpack.c.l.bf16 %v891
  %v894 = vunpack.c.h.bf16 %v891
  %v895 = vunpack.c.l.bf16 %v892
  %v896 = vunpack.c.h.bf16 %v892
  %v897 = vpack.c.bf16 %v887, %v887
  %898 = vmatprep.subr.bf16.mxu0 %v294
  %899 = vmatpush1.bf16.msra.mxu0 %v293
  %900 = vmatprep.subr.bf16.mxu0 %v290
  %901 = vmatpush1.bf16.msra.mxu0 %v289
  %902 = vmatprep.subr.bf16.mxu0 %v286
  %903 = vmatpush1.bf16.msra.mxu0 %v285
  %904 = vmatprep.subr.bf16.mxu0 %v282
  %905 = vmatpush1.bf16.msra.mxu0 %v281
  %906 = vmatprep.subr.bf16.mxu0 %v278
  %907 = vmatpush1.bf16.msra.mxu0 %v277
  %908 = vmatprep.subr.bf16.mxu0 %v274
  %909 = vmatpush1.bf16.msra.mxu0 %v273
  %910 = vmatprep.subr.bf16.mxu0 %v270
  %911 = vmatpush1.bf16.msra.mxu0 %v269
  %912 = vmatprep.subr.bf16.mxu0 %v266
  %913 = vmatpush1.bf16.msra.mxu0 %v265
  %914 = vmatprep.subr.bf16.mxu0 0
  %915 = vmatpush2.bf16.msra.mxu0 0
  %916 = vmatprep.subr.bf16.mxu0 0
  %917 = vmatpush2.bf16.msra.mxu0 0
  %918 = vmatprep.subr.bf16.mxu0 0
  %919 = vmatpush2.bf16.msra.mxu0 0
  %920 = vmatprep.subr.bf16.mxu0 0
  %921 = vmatpush2.bf16.msra.mxu0 0
  %922 = vmatprep.subr.bf16.mxu0 0
  %923 = vmatpush2.bf16.msra.mxu0 0
  %924 = vmatprep.subr.bf16.mxu0 0
  %925 = vmatpush2.bf16.msra.mxu0 0
  %926 = vmatprep.subr.bf16.mxu0 0
  %927 = vmatpush2.bf16.msra.mxu0 0
  %928 = vmatprep.subr.bf16.mxu0 0
  %929 = vmatpush2.bf16.msra.mxu0 0
  %930 = vmatprep.mubr.bf16.mxu0 0
  %931 = vmatmul.mubr.bf16.gmra.mxu0 %v897
  %v932 = vpop.f32.mrf.mxu0
  %v933 = vadd.f32 0.0, %v932
  %v934 = vpop.f32.mrf.mxu0
  %v935 = vadd.f32 0.0, %v934
  %v936 = vpop.f32.mrf.mxu0
  %v937 = vpop.f32.mrf.mxu0
  %938 = vdwg.mxu0
  %939 = vmatprep.subr.bf16.mxu0 %v296
  %940 = vmatpush1.bf16.msra.mxu0 %v295
  %941 = vmatprep.subr.bf16.mxu0 %v292
  %942 = vmatpush1.bf16.msra.mxu0 %v291
  %943 = vmatprep.subr.bf16.mxu0 %v288
  %944 = vmatpush1.bf16.msra.mxu0 %v287
  %945 = vmatprep.subr.bf16.mxu0 %v284
  %946 = vmatpush1.bf16.msra.mxu0 %v283
  %947 = vmatprep.subr.bf16.mxu0 %v280
  %948 = vmatpush1.bf16.msra.mxu0 %v279
  %949 = vmatprep.subr.bf16.mxu0 %v276
  %950 = vmatpush1.bf16.msra.mxu0 %v275
  %951 = vmatprep.subr.bf16.mxu0 %v272
  %952 = vmatpush1.bf16.msra.mxu0 %v271
  %953 = vmatprep.subr.bf16.mxu0 %v268
  %954 = vmatpush1.bf16.msra.mxu0 %v267
  %955 = vmatprep.subr.bf16.mxu0 0
  %956 = vmatpush2.bf16.msra.mxu0 0
  %957 = vmatprep.subr.bf16.mxu0 0
  %958 = vmatpush2.bf16.msra.mxu0 0
  %959 = vmatprep.subr.bf16.mxu0 0
  %960 = vmatpush2.bf16.msra.mxu0 0
  %961 = vmatprep.subr.bf16.mxu0 0
  %962 = vmatpush2.bf16.msra.mxu0 0
  %963 = vmatprep.subr.bf16.mxu0 0
  %964 = vmatpush2.bf16.msra.mxu0 0
  %965 = vmatprep.subr.bf16.mxu0 0
  %966 = vmatpush2.bf16.msra.mxu0 0
  %967 = vmatprep.subr.bf16.mxu0 0
  %968 = vmatpush2.bf16.msra.mxu0 0
  %969 = vmatprep.subr.bf16.mxu0 0
  %970 = vmatpush2.bf16.msra.mxu0 0
  %971 = vmatprep.mubr.bf16.mxu0 0
  %972 = vmatmul.mubr.bf16.gmra.mxu0 %v897
  %v973 = vpop.f32.mrf.mxu0
  %v974 = vadd.f32 0.0, %v973
  %v975 = vpop.f32.mrf.mxu0
  %v976 = vadd.f32 0.0, %v975
  %v977 = vpop.f32.mrf.mxu0
  %v978 = vpop.f32.mrf.mxu0
  %979 = vdwg.mxu0
  %v980 = vadd.f32 %v893, %v933
  %v981 = vadd.f32 %v894, %v935
  %v982 = vadd.f32 %v895, %v974
  %v983 = vadd.f32 %v896, %v976
  %v984 = vmul.f32 %v980, 0.5
  %v985 = vtanh.pop %v984
  %v986 = vmul.f32 %v985, 0.5
  %v987 = vadd.f32 %v986, 0.5
  %v988 = vmul.f32 %v981, 0.5
  %v989 = vtanh.pop %v988
  %v990 = vmul.f32 %v989, 0.5
  %v991 = vadd.f32 %v990, 0.5
  %v992 = vtanh.pop %v982
  %v993 = vmul.f32 %v983, 0.5
  %v994 = vtanh.pop %v993
  %v995 = vmul.f32 %v994, 0.5
  %v996 = vadd.f32 %v995, 0.5
  %v997 = vmul.f32 %v991, %v885
  %v998 = vmul.f32 %v987, %v992
  %v999 = vadd.f32 %v997, %v998
  %v1000 = vtanh.pop %v999
  %v1001 = vmul.f32 %v996, %v1000
  %s1002 = scalar_lea.vmem %s2, 40
  %1003 = vst [vmem:[%s1002] sm:$0xff] %v1001
  %s1004 = scalar_lea.vmem %s0, 96
  %v1005 = vld [vmem:[%s1004] sm:$0xff]
  %v1006 = vld [vmem:[%s1004 + $0x8] sm:$0xff]
  %v1007 = vunpack.c.l.bf16 %v1005
  %v1008 = vunpack.c.h.bf16 %v1005
  %v1009 = vunpack.c.l.bf16 %v1006
  %v1010 = vunpack.c.h.bf16 %v1006
  %v1011 = vpack.c.bf16 %v1001, %v1001
  %1012 = vmatprep.subr.bf16.mxu0 %v294
  %1013 = vmatpush1.bf16.msra.mxu0 %v293
  %1014 = vmatprep.subr.bf16.mxu0 %v290
  %1015 = vmatpush1.bf16.msra.mxu0 %v289
  %1016 = vmatprep.subr.bf16.mxu0 %v286
  %1017 = vmatpush1.bf16.msra.mxu0 %v285
  %1018 = vmatprep.subr.bf16.mxu0 %v282
  %1019 = vmatpush1.bf16.msra.mxu0 %v281
  %1020 = vmatprep.subr.bf16.mxu0 %v278
  %1021 = vmatpush1.bf16.msra.mxu0 %v277
  %1022 = vmatprep.subr.bf16.mxu0 %v274
  %1023 = vmatpush1.bf16.msra.mxu0 %v273
  %1024 = vmatprep.subr.bf16.mxu0 %v270
  %1025 = vmatpush1.bf16.msra.mxu0 %v269
  %1026 = vmatprep.subr.bf16.mxu0 %v266
  %1027 = vmatpush1.bf16.msra.mxu0 %v265
  %1028 = vmatprep.subr.bf16.mxu0 0
  %1029 = vmatpush2.bf16.msra.mxu0 0
  %1030 = vmatprep.subr.bf16.mxu0 0
  %1031 = vmatpush2.bf16.msra.mxu0 0
  %1032 = vmatprep.subr.bf16.mxu0 0
  %1033 = vmatpush2.bf16.msra.mxu0 0
  %1034 = vmatprep.subr.bf16.mxu0 0
  %1035 = vmatpush2.bf16.msra.mxu0 0
  %1036 = vmatprep.subr.bf16.mxu0 0
  %1037 = vmatpush2.bf16.msra.mxu0 0
  %1038 = vmatprep.subr.bf16.mxu0 0
  %1039 = vmatpush2.bf16.msra.mxu0 0
  %1040 = vmatprep.subr.bf16.mxu0 0
  %1041 = vmatpush2.bf16.msra.mxu0 0
  %1042 = vmatprep.subr.bf16.mxu0 0
  %1043 = vmatpush2.bf16.msra.mxu0 0
  %1044 = vmatprep.mubr.bf16.mxu0 0
  %1045 = vmatmul.mubr.bf16.gmra.mxu0 %v1011
  %v1046 = vpop.f32.mrf.mxu0
  %v1047 = vadd.f32 0.0, %v1046
  %v1048 = vpop.f32.mrf.mxu0
  %v1049 = vadd.f32 0.0, %v1048
  %v1050 = vpop.f32.mrf.mxu0
  %v1051 = vpop.f32.mrf.mxu0
  %1052 = vdwg.mxu0
  %1053 = vmatprep.subr.bf16.mxu0 %v296
  %1054 = vmatpush1.bf16.msra.mxu0 %v295
  %1055 = vmatprep.subr.bf16.mxu0 %v292
  %1056 = vmatpush1.bf16.msra.mxu0 %v291
  %1057 = vmatprep.subr.bf16.mxu0 %v288
  %1058 = vmatpush1.bf16.msra.mxu0 %v287
  %1059 = vmatprep.subr.bf16.mxu0 %v284
  %1060 = vmatpush1.bf16.msra.mxu0 %v283
  %1061 = vmatprep.subr.bf16.mxu0 %v280
  %1062 = vmatpush1.bf16.msra.mxu0 %v279
  %1063 = vmatprep.subr.bf16.mxu0 %v276
  %1064 = vmatpush1.bf16.msra.mxu0 %v275
  %1065 = vmatprep.subr.bf16.mxu0 %v272
  %1066 = vmatpush1.bf16.msra.mxu0 %v271
  %1067 = vmatprep.subr.bf16.mxu0 %v268
  %1068 = vmatpush1.bf16.msra.mxu0 %v267
  %1069 = vmatprep.subr.bf16.mxu0 0
  %1070 = vmatpush2.bf16.msra.mxu0 0
  %1071 = vmatprep.subr.bf16.mxu0 0
  %1072 = vmatpush2.bf16.msra.mxu0 0
  %1073 = vmatprep.subr.bf16.mxu0 0
  %1074 = vmatpush2.bf16.msra.mxu0 0
  %1075 = vmatprep.subr.bf16.mxu0 0
  %1076 = vmatpush2.bf16.msra.mxu0 0
  %1077 = vmatprep.subr.bf16.mxu0 0
  %1078 = vmatpush2.bf16.msra.mxu0 0
  %1079 = vmatprep.subr.bf16.mxu0 0
  %1080 = vmatpush2.bf16.msra.mxu0 0
  %1081 = vmatprep.subr.bf16.mxu0 0
  %1082 = vmatpush2.bf16.msra.mxu0 0
  %1083 = vmatprep.subr.bf16.mxu0 0
  %1084 = vmatpush2.bf16.msra.mxu0 0
  %1085 = vmatprep.mubr.bf16.mxu0 0
  %1086 = vmatmul.mubr.bf16.gmra.mxu0 %v1011
  %v1087 = vpop.f32.mrf.mxu0
  %v1088 = vadd.f32 0.0, %v1087
  %v1089 = vpop.f32.mrf.mxu0
  %v1090 = vadd.f32 0.0, %v1089
  %v1091 = vpop.f32.mrf.mxu0
  %v1092 = vpop.f32.mrf.mxu0
  %1093 = vdwg.mxu0
  %v1094 = vadd.f32 %v1007, %v1047
  %v1095 = vadd.f32 %v1008, %v1049
  %v1096 = vadd.f32 %v1009, %v1088
  %v1097 = vadd.f32 %v1010, %v1090
  %v1098 = vmul.f32 %v1094, 0.5
  %v1099 = vtanh.pop %v1098
  %v1100 = vmul.f32 %v1099, 0.5
  %v1101 = vadd.f32 %v1100, 0.5
  %v1102 = vmul.f32 %v1095, 0.5
  %v1103 = vtanh.pop %v1102
  %v1104 = vmul.f32 %v1103, 0.5
  %v1105 = vadd.f32 %v1104, 0.5
  %v1106 = vtanh.pop %v1096
  %v1107 = vmul.f32 %v1097, 0.5
  %v1108 = vtanh.pop %v1107
  %v1109 = vmul.f32 %v1108, 0.5
  %v1110 = vadd.f32 %v1109, 0.5
  %v1111 = vmul.f32 %v1105, %v999
  %v1112 = vmul.f32 %v1101, %v1106
  %v1113 = vadd.f32 %v1111, %v1112
  %v1114 = vtanh.pop %v1113
  %v1115 = vmul.f32 %v1110, %v1114
  %s1116 = scalar_lea.vmem %s2, 48
  %1117 = vst [vmem:[%s1116] sm:$0xff] %v1115
  %s1118 = scalar_lea.vmem %s0, 112
  %v1119 = vld [vmem:[%s1118] sm:$0xff]
  %v1120 = vld [vmem:[%s1118 + $0x8] sm:$0xff]
  %v1121 = vunpack.c.l.bf16 %v1119
  %v1122 = vunpack.c.h.bf16 %v1119
  %v1123 = vunpack.c.l.bf16 %v1120
  %v1124 = vunpack.c.h.bf16 %v1120
  %v1125 = vpack.c.bf16 %v1115, %v1115
  %1126 = vmatprep.subr.bf16.mxu0 %v294
  %1127 = vmatpush1.bf16.msra.mxu0 %v293
  %1128 = vmatprep.subr.bf16.mxu0 %v290
  %1129 = vmatpush1.bf16.msra.mxu0 %v289
  %1130 = vmatprep.subr.bf16.mxu0 %v286
  %1131 = vmatpush1.bf16.msra.mxu0 %v285
  %1132 = vmatprep.subr.bf16.mxu0 %v282
  %1133 = vmatpush1.bf16.msra.mxu0 %v281
  %1134 = vmatprep.subr.bf16.mxu0 %v278
  %1135 = vmatpush1.bf16.msra.mxu0 %v277
  %1136 = vmatprep.subr.bf16.mxu0 %v274
  %1137 = vmatpush1.bf16.msra.mxu0 %v273
  %1138 = vmatprep.subr.bf16.mxu0 %v270
  %1139 = vmatpush1.bf16.msra.mxu0 %v269
  %1140 = vmatprep.subr.bf16.mxu0 %v266
  %1141 = vmatpush1.bf16.msra.mxu0 %v265
  %1142 = vmatprep.subr.bf16.mxu0 0
  %1143 = vmatpush2.bf16.msra.mxu0 0
  %1144 = vmatprep.subr.bf16.mxu0 0
  %1145 = vmatpush2.bf16.msra.mxu0 0
  %1146 = vmatprep.subr.bf16.mxu0 0
  %1147 = vmatpush2.bf16.msra.mxu0 0
  %1148 = vmatprep.subr.bf16.mxu0 0
  %1149 = vmatpush2.bf16.msra.mxu0 0
  %1150 = vmatprep.subr.bf16.mxu0 0
  %1151 = vmatpush2.bf16.msra.mxu0 0
  %1152 = vmatprep.subr.bf16.mxu0 0
  %1153 = vmatpush2.bf16.msra.mxu0 0
  %1154 = vmatprep.subr.bf16.mxu0 0
  %1155 = vmatpush2.bf16.msra.mxu0 0
  %1156 = vmatprep.subr.bf16.mxu0 0
  %1157 = vmatpush2.bf16.msra.mxu0 0
  %1158 = vmatprep.mubr.bf16.mxu0 0
  %1159 = vmatmul.mubr.bf16.gmra.mxu0 %v1125
  %v1160 = vpop.f32.mrf.mxu0
  %v1161 = vadd.f32 0.0, %v1160
  %v1162 = vpop.f32.mrf.mxu0
  %v1163 = vadd.f32 0.0, %v1162
  %v1164 = vpop.f32.mrf.mxu0
  %v1165 = vpop.f32.mrf.mxu0
  %1166 = vdwg.mxu0
  %1167 = vmatprep.subr.bf16.mxu0 %v296
  %1168 = vmatpush1.bf16.msra.mxu0 %v295
  %1169 = vmatprep.subr.bf16.mxu0 %v292
  %1170 = vmatpush1.bf16.msra.mxu0 %v291
  %1171 = vmatprep.subr.bf16.mxu0 %v288
  %1172 = vmatpush1.bf16.msra.mxu0 %v287
  %1173 = vmatprep.subr.bf16.mxu0 %v284
  %1174 = vmatpush1.bf16.msra.mxu0 %v283
  %1175 = vmatprep.subr.bf16.mxu0 %v280
  %1176 = vmatpush1.bf16.msra.mxu0 %v279
  %1177 = vmatprep.subr.bf16.mxu0 %v276
  %1178 = vmatpush1.bf16.msra.mxu0 %v275
  %1179 = vmatprep.subr.bf16.mxu0 %v272
  %1180 = vmatpush1.bf16.msra.mxu0 %v271
  %1181 = vmatprep.subr.bf16.mxu0 %v268
  %1182 = vmatpush1.bf16.msra.mxu0 %v267
  %1183 = vmatprep.subr.bf16.mxu0 0
  %1184 = vmatpush2.bf16.msra.mxu0 0
  %1185 = vmatprep.subr.bf16.mxu0 0
  %1186 = vmatpush2.bf16.msra.mxu0 0
  %1187 = vmatprep.subr.bf16.mxu0 0
  %1188 = vmatpush2.bf16.msra.mxu0 0
  %1189 = vmatprep.subr.bf16.mxu0 0
  %1190 = vmatpush2.bf16.msra.mxu0 0
  %1191 = vmatprep.subr.bf16.mxu0 0
  %1192 = vmatpush2.bf16.msra.mxu0 0
  %1193 = vmatprep.subr.bf16.mxu0 0
  %1194 = vmatpush2.bf16.msra.mxu0 0
  %1195 = vmatprep.subr.bf16.mxu0 0
  %1196 = vmatpush2.bf16.msra.mxu0 0
  %1197 = vmatprep.subr.bf16.mxu0 0
  %1198 = vmatpush2.bf16.msra.mxu0 0
  %1199 = vmatprep.mubr.bf16.mxu0 0
  %1200 = vmatmul.mubr.bf16.gmra.mxu0 %v1125
  %v1201 = vpop.f32.mrf.mxu0
  %v1202 = vadd.f32 0.0, %v1201
  %v1203 = vpop.f32.mrf.mxu0
  %v1204 = vadd.f32 0.0, %v1203
  %v1205 = vpop.f32.mrf.mxu0
  %v1206 = vpop.f32.mrf.mxu0
  %1207 = vdwg.mxu0
  %v1208 = vadd.f32 %v1121, %v1161
  %v1209 = vadd.f32 %v1122, %v1163
  %v1210 = vadd.f32 %v1123, %v1202
  %v1211 = vadd.f32 %v1124, %v1204
  %v1212 = vmul.f32 %v1208, 0.5
  %v1213 = vtanh.pop %v1212
  %v1214 = vmul.f32 %v1213, 0.5
  %v1215 = vadd.f32 %v1214, 0.5
  %v1216 = vmul.f32 %v1209, 0.5
  %v1217 = vtanh.pop %v1216
  %v1218 = vmul.f32 %v1217, 0.5
  %v1219 = vadd.f32 %v1218, 0.5
  %v1220 = vtanh.pop %v1210
  %v1221 = vmul.f32 %v1211, 0.5
  %v1222 = vtanh.pop %v1221
  %v1223 = vmul.f32 %v1222, 0.5
  %v1224 = vadd.f32 %v1223, 0.5
  %v1225 = vmul.f32 %v1219, %v1113
  %v1226 = vmul.f32 %v1215, %v1220
  %v1227 = vadd.f32 %v1225, %v1226
  %v1228 = vtanh.pop %v1227
  %v1229 = vmul.f32 %v1224, %v1228
  %s1230 = scalar_lea.vmem %s2, 56
  %1231 = vst [vmem:[%s1230] sm:$0xff] %v1229
  %1232 = vst [vmem:[%s3] sm:$0xff] %v1229
  %1233 = vst [vmem:[%s4] sm:$0xff] %v1227
  // Predicated region
  $region44: #{encoder_lstm_forward.1} parent=0 // pred_check
    _
  $region45: #{encoder_lstm_forward.1} parent=0 // pred_check_branch
    %1235 = sbr.rel (0) target = $region47
  $region46: #{encoder_lstm_forward.1} parent=0 // pred_region
    _
  $region47: #{encoder_lstm_forward.1} parent=0 // pred_fallthru
    _
  // Predicated region
  $region48: #{encoder_lstm_forward.1} parent=0 // pred_check
    _
  $region49: #{encoder_lstm_forward.1} parent=0 // pred_check_branch
    %1237 = sbr.rel (0) target = $region51
  $region50: #{encoder_lstm_forward.1} parent=0 // pred_region
    _
  $region51: #{encoder_lstm_forward.1} parent=0 // pred_fallthru
    _
  // Predicated region
  $region52: #{encoder_lstm_forward.1} parent=0 // pred_check
    _
  $region53: #{encoder_lstm_forward.1} parent=0 // pred_check_branch
    %1239 = sbr.rel (0) target = $region55
  $region54: #{encoder_lstm_forward.1} parent=0 // pred_region
    _
  $region55: #{encoder_lstm_forward.1} parent=0 // pred_fallthru
    _
  // Predicated region
  $region56: #{encoder_lstm_forward.1} parent=0 // pred_check
    _
  $region57: #{encoder_lstm_forward.1} parent=0 // pred_check_branch
    %1241 = sbr.rel (0) target = $region59
  $region58: #{encoder_lstm_forward.1} parent=0 // pred_region
    _
  $region59: #{encoder_lstm_forward.1} parent=0 // pred_fallthru
    _
  // Predicated region
  $region60: #{encoder_lstm_forward.1} parent=0 // pred_check
    _
  $region61: #{encoder_lstm_forward.1} parent=0 // pred_check_branch
    %1243 = sbr.rel (0) target = $region63
  $region62: #{encoder_lstm_forward.1} parent=0 // pred_region
    _
  $region63: #{encoder_lstm_forward.1} parent=0 // pred_fallthru
    _
  // Predicated region
  $region64: #{encoder_lstm_forward.1} parent=0 // pred_check
    _
  $region65: #{encoder_lstm_forward.1} parent=0 // pred_check_branch
    %1245 = sbr.rel (0) target = $region67
  $region66: #{encoder_lstm_forward.1} parent=0 // pred_region
    _
  $region67: #{encoder_lstm_forward.1} parent=0 // pred_fallthru
    _
  %1246 = vsyncmov [#allocation3]
  %s1247 = vpop.sfrf %1246
  %p1248 = scmp.eq.s32.totalorder %s1247, 0
  %p1249 = pneg %p1248
  %1251 = shalt.err (%p1249)

</llo_original>
